<compile_context>
chip_gen: v6e
topology: v6e:2x2x1
jax: 0.10.0
libtpu: 0.0.40
codegen_flags: <defaults>
</compile_context>

<pallas_src>
import functools
import math

import jax
import jax.numpy as jnp
from jax.experimental import pallas as pl
from jax.experimental.pallas import tpu as pltpu


# ----------------------------------------------------------------------------
# Fused Pallas kernel: all message-passing steps in one call
# ----------------------------------------------------------------------------
def _fused_forward_kernel(num_steps, m_layers, use_i, residual, *refs):
    refs = list(refs)
    out_ref = refs.pop()                      # single output
    x_ref, gsrc_ref, gdst_ref = refs[0], refs[1], refs[2]
    p = 3

    f32 = jnp.float32
    x = x_ref[...]                            # [N, C0]  f32 activations
    gsrc = gsrc_ref[...].astype(f32)          # [E, N]   one-hot of source node j
    gdst = gdst_ref[...].astype(f32)          # [E, N]   one-hot of target node i

    for i in range(num_steps):
        # gather endpoint features (row selection via one-hot matmul)
        xj = jnp.dot(gsrc, x, preferred_element_type=f32)              # x_j  [E, cin]
        xi = jnp.dot(gdst, x, preferred_element_type=f32) if use_i else None

        h = None
        for l in range(m_layers):
            if l == 0 and use_i:
                Wi = refs[p][...]             # [cin, T*cout]  (x_i half, stacked over types)
                Wj = refs[p + 1][...]         # [cin, T*cout]  (x_j half)
                p += 2
                m = (jnp.dot(xi, Wi, preferred_element_type=f32)
                     + jnp.dot(xj, Wj, preferred_element_type=f32))
            else:
                W = refs[p][...]              # [c_in_l, T*cout]
                p += 1
                src_h = xj if l == 0 else h
                m = jnp.dot(src_h, W, preferred_element_type=f32)      # [E, T*cout]

            bflat = refs[p][...]              # [1, T*cout]   per-type bias, flattened
            ea_exp = refs[p + 1][...].astype(f32)   # [E, T*cout] edge-type one-hot, expanded
            rsum = refs[p + 2][...].astype(f32)     # [T*cout, cout] stacked identities
            p += 3

            # per-edge-type select + bias: one masked VPU mul + one block-sum MXU matmul
            h = jnp.dot(ea_exp * (m + bflat), rsum, preferred_element_type=f32)
            if l + 1 < m_layers:
                h = jnp.maximum(h, 0.0)       # inner ReLU (dropout = identity in eval)

        # aggr='add': sum messages onto target node i, contracting over E directly
        agg = jax.lax.dot_general(gdst, h, (((0,), (0,)), ((), ())),
                                  preferred_element_type=f32)          # [N, cout]
        if i + 1 < num_steps:
            agg = jnp.maximum(agg, 0.0)       # outer activation (identity on last step)

        if residual:
            Wr = refs[p][...]                 # [cin, K*cout]  (stacked over node ids)
            brflat = refs[p + 1][...]         # [1, K*cout]
            sel_exp = refs[p + 2][...].astype(f32)   # [N, K*cout]  node-id one-hot, expanded
            rr = refs[p + 3][...].astype(f32)        # [K*cout, cout]
            p += 4
            r = jnp.dot(x, Wr, preferred_element_type=f32) + brflat    # [N, K*cout]
            x = agg + jnp.dot(sel_exp * r, rr, preferred_element_type=f32)
        else:
            x = agg
        # TODO(synk): nn.Dropout is identity in eval mode.

    out_ref[...] = x.astype(out_ref.dtype)


# ----------------------------------------------------------------------------
# Wrapper (glue): pre-stack disjoint weights, build one fused pallas_call
# ----------------------------------------------------------------------------
_VMEM = pl.BlockSpec(memory_space=pltpu.MemorySpace.VMEM)


def disjoint_gnn_forward(params, x, edge_index, edge_attr, node_ids,
                         use_i=True, residual=True):
    conv_params, res_params, num_steps = params
    N = x.shape[0]
    m_layers = len(conv_params[0][0])
    src, dst = edge_index[0], edge_index[1]
    bf16 = jnp.bfloat16

    # one-hot gather/scatter operands in bf16 (0/1 exact; halves their HBM bytes)
    gsrc = jax.nn.one_hot(src, N, dtype=bf16)            # [E, N]
    gdst = jax.nn.one_hot(dst, N, dtype=bf16)            # [E, N]

    args = [x.astype(jnp.float32), gsrc, gdst]

    for i in range(num_steps):
        ws, bs = conv_params[i]
        for l, (W, b) in enumerate(zip(ws, bs)):         # W: [T, c_in, c_out], b: [T, c_out]
            T, cin_l, cout_l = W.shape
            w_stack = jnp.transpose(W, (1, 0, 2)).reshape(cin_l, T * cout_l)
            if l == 0 and use_i:
                half = cin_l // 2                        # concat([x_i, x_j]) -> split halves
                args.extend([w_stack[:half], w_stack[half:]])
            else:
                args.append(w_stack)
            args.append(b.reshape(1, T * cout_l))                                  # bias flat
            args.append(jnp.repeat(edge_attr, cout_l, axis=1).astype(bf16))        # ea_exp
            args.append(jnp.tile(jnp.eye(cout_l, dtype=jnp.float32), (T, 1)).astype(bf16))
        if residual:
            wr, br = res_params[i]                       # wr: [K, c_in, c_out], br: [K, c_out]
            K, rcin, rcout = wr.shape
            args.append(jnp.transpose(wr, (1, 0, 2)).reshape(rcin, K * rcout))
            args.append(br.reshape(1, K * rcout))
            args.append(jnp.repeat(node_ids, rcout, axis=1).astype(bf16))          # sel_exp
            args.append(jnp.tile(jnp.eye(rcout, dtype=jnp.float32), (K, 1)).astype(bf16))

    c_final = conv_params[-1][0][-1].shape[-1]
    kernel = functools.partial(_fused_forward_kernel, num_steps, m_layers,
                               use_i, residual)
    return pl.pallas_call(
        kernel,
        out_shape=jax.ShapeDtypeStruct((N, c_final), jnp.float32),
        in_specs=[_VMEM] * len(args),
        out_specs=_VMEM,
        compiler_params=pltpu.CompilerParams(vmem_limit_bytes=32 * 1024 * 1024),
    )(*args)


# ----------------------------------------------------------------------------
# Parameter init (matches the module's per-step / per-layer structure)
# ----------------------------------------------------------------------------
def init_params(key, c_list, m_layers, edge_dim, num_nodes, residual, use_i):
    assert (len(c_list) - 1) % m_layers == 0
    num_steps = (len(c_list) - 1) // m_layers
    conv_params, res_params = [], []
    for i in range(num_steps):
        m_channels = list(c_list[m_layers * i: m_layers * (i + 1) + 1])
        res_in, res_out = m_channels[0], m_channels[-1]
        if use_i:
            m_channels[0] *= 2
        ws, bs = [], []
        for l in range(len(m_channels) - 1):
            key, k1, k2 = jax.random.split(key, 3)
            fan_in = m_channels[l]
            ws.append(jax.random.normal(k1, (edge_dim, m_channels[l], m_channels[l + 1]),
                                        jnp.float32) * math.sqrt(2.0 / fan_in))
            bs.append(jax.random.normal(k2, (edge_dim, m_channels[l + 1]),
                                        jnp.float32) * 0.01)
        conv_params.append((ws, bs))
        if residual:
            key, k1, k2 = jax.random.split(key, 3)
            wr = jax.random.normal(k1, (num_nodes, res_in, res_out),
                                   jnp.float32) * math.sqrt(2.0 / res_in)
            br = jax.random.normal(k2, (num_nodes, res_out), jnp.float32) * 0.01
            res_params.append((wr, br))
    return conv_params, res_params, num_steps


# ----------------------------------------------------------------------------
# Pure-JAX reference (for correctness check only)
# ----------------------------------------------------------------------------
def ref_forward(params, x, edge_index, edge_attr, node_ids,
                use_i=True, residual=True):
    conv_params, res_params, num_steps = params
    N = x.shape[0]
    src, dst = edge_index[0], edge_index[1]
    gdst = jax.nn.one_hot(dst, N, dtype=jnp.float32)
    for i in range(num_steps):
        ws, bs = conv_params[i]
        xi, xj = x[dst], x[src]
        h = jnp.concatenate([xi, xj], axis=-1) if use_i else xj
        for l, (W, b) in enumerate(zip(ws, bs)):
            We = jnp.einsum('et,tio->eio', edge_attr, W)
            h = jnp.einsum('ei,eio->eo', h, We) + edge_attr @ b
            if l + 1 < len(ws):
                h = jax.nn.relu(h)
        agg = gdst.T @ h
        if (i + 1) < num_steps:
            agg = jax.nn.relu(agg)
        if residual:
            wr, br = res_params[i]
            Wn = jnp.einsum('nk,kio->nio', node_ids, wr)
            x = agg + jnp.einsum('ni,nio->no', x, Wn) + node_ids @ br
        else:
            x = agg
    return x


# ----------------------------------------------------------------------------
if __name__ == "__main__":
    key = jax.random.PRNGKey(0)

    num_nodes = 4          # SCM nodes per graph
    B = 2                  # graphs in the batch
    N = B * num_nodes
    c_list = [8, 16, 16, 16, 8]
    m_layers = 2
    # per-graph edges (src, dst, edge_type); each edge type has its own params
    base_edges = [(0, 1, 0), (1, 2, 1), (2, 3, 2), (0, 0, 3), (3, 3, 4)]
    edge_dim = 5

    src, dst, etype = [], [], []
    for b in range(B):
        off = b * num_nodes
        for s, d, t in base_edges:
            src.append(s + off)
            dst.append(d + off)
            etype.append(t)
    edge_index = jnp.array([src, dst], dtype=jnp.int32)                        # [2, E]
    edge_attr = jax.nn.one_hot(jnp.array(etype), edge_dim, dtype=jnp.float32)  # [E, T]
    node_ids = jax.nn.one_hot(jnp.arange(N) % num_nodes, num_nodes,
                              dtype=jnp.float32)                               # [N, K]

    key, kx, kp = jax.random.split(key, 3)
    x = jax.random.normal(kx, (N, c_list[0]), jnp.float32)

    params = init_params(kp, c_list, m_layers, edge_dim, num_nodes,
                         residual=True, use_i=True)

    out = disjoint_gnn_forward(params, x, edge_index, edge_attr, node_ids,
                               use_i=True, residual=True)
    out = jax.block_until_ready(out)

    ref = ref_forward(params, x, edge_index, edge_attr, node_ids,
                      use_i=True, residual=True)
    assert out.shape == (N, c_list[-1])
    assert jnp.allclose(out, ref, atol=1e-4, rtol=1e-4), (out, ref)

    print("KERNEL_OK")
</pallas_src>

<mosaic_0001>
module attributes {stable_mosaic.version = 11 : i64} {
  func.func @_fused_forward_kernel(%arg0: memref<8x8xf32, #tpu.memory_space<vmem>>, %arg1: memref<10x8xbf16, #tpu.memory_space<vmem>>, %arg2: memref<10x8xbf16, #tpu.memory_space<vmem>>, %arg3: memref<8x80xf32, #tpu.memory_space<vmem>>, %arg4: memref<8x80xf32, #tpu.memory_space<vmem>>, %arg5: memref<1x80xf32, #tpu.memory_space<vmem>>, %arg6: memref<10x80xbf16, #tpu.memory_space<vmem>>, %arg7: memref<80x16xbf16, #tpu.memory_space<vmem>>, %arg8: memref<16x80xf32, #tpu.memory_space<vmem>>, %arg9: memref<1x80xf32, #tpu.memory_space<vmem>>, %arg10: memref<10x80xbf16, #tpu.memory_space<vmem>>, %arg11: memref<80x16xbf16, #tpu.memory_space<vmem>>, %arg12: memref<8x64xf32, #tpu.memory_space<vmem>>, %arg13: memref<1x64xf32, #tpu.memory_space<vmem>>, %arg14: memref<8x64xbf16, #tpu.memory_space<vmem>>, %arg15: memref<64x16xbf16, #tpu.memory_space<vmem>>, %arg16: memref<16x80xf32, #tpu.memory_space<vmem>>, %arg17: memref<16x80xf32, #tpu.memory_space<vmem>>, %arg18: memref<1x80xf32, #tpu.memory_space<vmem>>, %arg19: memref<10x80xbf16, #tpu.memory_space<vmem>>, %arg20: memref<80x16xbf16, #tpu.memory_space<vmem>>, %arg21: memref<16x40xf32, #tpu.memory_space<vmem>>, %arg22: memref<1x40xf32, #tpu.memory_space<vmem>>, %arg23: memref<10x40xbf16, #tpu.memory_space<vmem>>, %arg24: memref<40x8xbf16, #tpu.memory_space<vmem>>, %arg25: memref<16x32xf32, #tpu.memory_space<vmem>>, %arg26: memref<1x32xf32, #tpu.memory_space<vmem>>, %arg27: memref<8x32xbf16, #tpu.memory_space<vmem>>, %arg28: memref<32x8xbf16, #tpu.memory_space<vmem>>, %arg29: memref<8x8xf32, #tpu.memory_space<vmem>>) attributes {dimension_semantics = [], scalar_prefetch = 0 : i64, scratch_operands = 0 : i64, tpu.core_type = #tpu.core_type<tc>} {
    %c0 = arith.constant 0 : index
    %c0_0 = arith.constant 0 : index
    %0 = vector.load %arg0[%c0, %c0_0] : memref<8x8xf32, #tpu.memory_space<vmem>>, vector<8x8xf32>
    %c0_1 = arith.constant 0 : index
    %c0_2 = arith.constant 0 : index
    %1 = vector.load %arg1[%c0_1, %c0_2] : memref<10x8xbf16, #tpu.memory_space<vmem>>, vector<10x8xbf16>
    %2 = arith.extf %1 : vector<10x8xbf16> to vector<10x8xf32>
    %c0_3 = arith.constant 0 : index
    %c0_4 = arith.constant 0 : index
    %3 = vector.load %arg2[%c0_3, %c0_4] : memref<10x8xbf16, #tpu.memory_space<vmem>>, vector<10x8xbf16>
    %4 = arith.extf %3 : vector<10x8xbf16> to vector<10x8xf32>
    %cst = arith.constant dense<0.000000e+00> : vector<10x8xf32>
    %5 = tpu.matmul %2, %0, %cst {dimension_numbers = #tpu.dot_dimension_numbers<[1], [0], [0], [1], [0, 0, 1, 1], [], []>} : vector<10x8xf32>, vector<8x8xf32>, vector<10x8xf32> -> vector<10x8xf32>
    %cst_5 = arith.constant dense<0.000000e+00> : vector<10x8xf32>
    %6 = tpu.matmul %4, %0, %cst_5 {dimension_numbers = #tpu.dot_dimension_numbers<[1], [0], [0], [1], [0, 0, 1, 1], [], []>} : vector<10x8xf32>, vector<8x8xf32>, vector<10x8xf32> -> vector<10x8xf32>
    %c0_6 = arith.constant 0 : index
    %c0_7 = arith.constant 0 : index
    %7 = vector.load %arg3[%c0_6, %c0_7] : memref<8x80xf32, #tpu.memory_space<vmem>>, vector<8x80xf32>
    %c0_8 = arith.constant 0 : index
    %c0_9 = arith.constant 0 : index
    %8 = vector.load %arg4[%c0_8, %c0_9] : memref<8x80xf32, #tpu.memory_space<vmem>>, vector<8x80xf32>
    %cst_10 = arith.constant dense<0.000000e+00> : vector<10x80xf32>
    %9 = tpu.matmul %6, %7, %cst_10 {dimension_numbers = #tpu.dot_dimension_numbers<[1], [0], [0], [1], [0, 0, 1, 1], [], []>} : vector<10x8xf32>, vector<8x80xf32>, vector<10x80xf32> -> vector<10x80xf32>
    %cst_11 = arith.constant dense<0.000000e+00> : vector<10x80xf32>
    %10 = tpu.matmul %5, %8, %cst_11 {dimension_numbers = #tpu.dot_dimension_numbers<[1], [0], [0], [1], [0, 0, 1, 1], [], []>} : vector<10x8xf32>, vector<8x80xf32>, vector<10x80xf32> -> vector<10x80xf32>
    %11 = arith.addf %9, %10 : vector<10x80xf32>
    %c0_12 = arith.constant 0 : index
    %c0_13 = arith.constant 0 : index
    %12 = vector.load %arg5[%c0_12, %c0_13] : memref<1x80xf32, #tpu.memory_space<vmem>>, vector<1x80xf32>
    %c0_14 = arith.constant 0 : index
    %c0_15 = arith.constant 0 : index
    %13 = vector.load %arg6[%c0_14, %c0_15] : memref<10x80xbf16, #tpu.memory_space<vmem>>, vector<10x80xbf16>
    %14 = arith.extf %13 : vector<10x80xbf16> to vector<10x80xf32>
    %c0_16 = arith.constant 0 : index
    %c0_17 = arith.constant 0 : index
    %15 = vector.load %arg7[%c0_16, %c0_17] : memref<80x16xbf16, #tpu.memory_space<vmem>>, vector<80x16xbf16>
    %16 = arith.extf %15 : vector<80x16xbf16> to vector<80x16xf32>
    %17 = vector.broadcast %12 : vector<1x80xf32> to vector<10x80xf32>
    %18 = arith.addf %11, %17 : vector<10x80xf32>
    %19 = arith.mulf %14, %18 : vector<10x80xf32>
    %cst_18 = arith.constant dense<0.000000e+00> : vector<10x16xf32>
    %20 = tpu.matmul %19, %16, %cst_18 {dimension_numbers = #tpu.dot_dimension_numbers<[1], [0], [0], [1], [0, 0, 1, 1], [], []>} : vector<10x80xf32>, vector<80x16xf32>, vector<10x16xf32> -> vector<10x16xf32>
    %cst_19 = arith.constant 0.000000e+00 : f32
    %21 = vector.broadcast %cst_19 : f32 to vector<10x16xf32>
    %22 = arith.maximumf %20, %21 : vector<10x16xf32>
    %c0_20 = arith.constant 0 : index
    %c0_21 = arith.constant 0 : index
    %23 = vector.load %arg8[%c0_20, %c0_21] : memref<16x80xf32, #tpu.memory_space<vmem>>, vector<16x80xf32>
    %cst_22 = arith.constant dense<0.000000e+00> : vector<10x80xf32>
    %24 = tpu.matmul %22, %23, %cst_22 {dimension_numbers = #tpu.dot_dimension_numbers<[1], [0], [0], [1], [0, 0, 1, 1], [], []>} : vector<10x16xf32>, vector<16x80xf32>, vector<10x80xf32> -> vector<10x80xf32>
    %c0_23 = arith.constant 0 : index
    %c0_24 = arith.constant 0 : index
    %25 = vector.load %arg9[%c0_23, %c0_24] : memref<1x80xf32, #tpu.memory_space<vmem>>, vector<1x80xf32>
    %c0_25 = arith.constant 0 : index
    %c0_26 = arith.constant 0 : index
    %26 = vector.load %arg10[%c0_25, %c0_26] : memref<10x80xbf16, #tpu.memory_space<vmem>>, vector<10x80xbf16>
    %27 = arith.extf %26 : vector<10x80xbf16> to vector<10x80xf32>
    %c0_27 = arith.constant 0 : index
    %c0_28 = arith.constant 0 : index
    %28 = vector.load %arg11[%c0_27, %c0_28] : memref<80x16xbf16, #tpu.memory_space<vmem>>, vector<80x16xbf16>
    %29 = arith.extf %28 : vector<80x16xbf16> to vector<80x16xf32>
    %30 = vector.broadcast %25 : vector<1x80xf32> to vector<10x80xf32>
    %31 = arith.addf %24, %30 : vector<10x80xf32>
    %32 = arith.mulf %27, %31 : vector<10x80xf32>
    %cst_29 = arith.constant dense<0.000000e+00> : vector<10x16xf32>
    %33 = tpu.matmul %32, %29, %cst_29 {dimension_numbers = #tpu.dot_dimension_numbers<[1], [0], [0], [1], [0, 0, 1, 1], [], []>} : vector<10x80xf32>, vector<80x16xf32>, vector<10x16xf32> -> vector<10x16xf32>
    %cst_30 = arith.constant dense<0.000000e+00> : vector<8x16xf32>
    %34 = tpu.matmul %4, %33, %cst_30 {dimension_numbers = #tpu.dot_dimension_numbers<[0], [0], [1], [1], [0, 1, 1, 1], [], []>} : vector<10x8xf32>, vector<10x16xf32>, vector<8x16xf32> -> vector<8x16xf32>
    %cst_31 = arith.constant 0.000000e+00 : f32
    %35 = vector.broadcast %cst_31 : f32 to vector<8x16xf32>
    %36 = arith.maximumf %34, %35 : vector<8x16xf32>
    %c0_32 = arith.constant 0 : index
    %c0_33 = arith.constant 0 : index
    %37 = vector.load %arg12[%c0_32, %c0_33] : memref<8x64xf32, #tpu.memory_space<vmem>>, vector<8x64xf32>
    %c0_34 = arith.constant 0 : index
    %c0_35 = arith.constant 0 : index
    %38 = vector.load %arg13[%c0_34, %c0_35] : memref<1x64xf32, #tpu.memory_space<vmem>>, vector<1x64xf32>
    %c0_36 = arith.constant 0 : index
    %c0_37 = arith.constant 0 : index
    %39 = vector.load %arg14[%c0_36, %c0_37] : memref<8x64xbf16, #tpu.memory_space<vmem>>, vector<8x64xbf16>
    %40 = arith.extf %39 : vector<8x64xbf16> to vector<8x64xf32>
    %c0_38 = arith.constant 0 : index
    %c0_39 = arith.constant 0 : index
    %41 = vector.load %arg15[%c0_38, %c0_39] : memref<64x16xbf16, #tpu.memory_space<vmem>>, vector<64x16xbf16>
    %42 = arith.extf %41 : vector<64x16xbf16> to vector<64x16xf32>
    %cst_40 = arith.constant dense<0.000000e+00> : vector<8x64xf32>
    %43 = tpu.matmul %0, %37, %cst_40 {dimension_numbers = #tpu.dot_dimension_numbers<[1], [0], [0], [1], [0, 0, 1, 1], [], []>} : vector<8x8xf32>, vector<8x64xf32>, vector<8x64xf32> -> vector<8x64xf32>
    %44 = vector.broadcast %38 : vector<1x64xf32> to vector<8x64xf32>
    %45 = arith.addf %43, %44 : vector<8x64xf32>
    %46 = arith.mulf %40, %45 : vector<8x64xf32>
    %cst_41 = arith.constant dense<0.000000e+00> : vector<8x16xf32>
    %47 = tpu.matmul %46, %42, %cst_41 {dimension_numbers = #tpu.dot_dimension_numbers<[1], [0], [0], [1], [0, 0, 1, 1], [], []>} : vector<8x64xf32>, vector<64x16xf32>, vector<8x16xf32> -> vector<8x16xf32>
    %48 = arith.addf %36, %47 : vector<8x16xf32>
    %cst_42 = arith.constant dense<0.000000e+00> : vector<10x16xf32>
    %49 = tpu.matmul %2, %48, %cst_42 {dimension_numbers = #tpu.dot_dimension_numbers<[1], [0], [0], [1], [0, 0, 1, 1], [], []>} : vector<10x8xf32>, vector<8x16xf32>, vector<10x16xf32> -> vector<10x16xf32>
    %cst_43 = arith.constant dense<0.000000e+00> : vector<10x16xf32>
    %50 = tpu.matmul %4, %48, %cst_43 {dimension_numbers = #tpu.dot_dimension_numbers<[1], [0], [0], [1], [0, 0, 1, 1], [], []>} : vector<10x8xf32>, vector<8x16xf32>, vector<10x16xf32> -> vector<10x16xf32>
    %c0_44 = arith.constant 0 : index
    %c0_45 = arith.constant 0 : index
    %51 = vector.load %arg16[%c0_44, %c0_45] : memref<16x80xf32, #tpu.memory_space<vmem>>, vector<16x80xf32>
    %c0_46 = arith.constant 0 : index
    %c0_47 = arith.constant 0 : index
    %52 = vector.load %arg17[%c0_46, %c0_47] : memref<16x80xf32, #tpu.memory_space<vmem>>, vector<16x80xf32>
    %cst_48 = arith.constant dense<0.000000e+00> : vector<10x80xf32>
    %53 = tpu.matmul %50, %51, %cst_48 {dimension_numbers = #tpu.dot_dimension_numbers<[1], [0], [0], [1], [0, 0, 1, 1], [], []>} : vector<10x16xf32>, vector<16x80xf32>, vector<10x80xf32> -> vector<10x80xf32>
    %cst_49 = arith.constant dense<0.000000e+00> : vector<10x80xf32>
    %54 = tpu.matmul %49, %52, %cst_49 {dimension_numbers = #tpu.dot_dimension_numbers<[1], [0], [0], [1], [0, 0, 1, 1], [], []>} : vector<10x16xf32>, vector<16x80xf32>, vector<10x80xf32> -> vector<10x80xf32>
    %55 = arith.addf %53, %54 : vector<10x80xf32>
    %c0_50 = arith.constant 0 : index
    %c0_51 = arith.constant 0 : index
    %56 = vector.load %arg18[%c0_50, %c0_51] : memref<1x80xf32, #tpu.memory_space<vmem>>, vector<1x80xf32>
    %c0_52 = arith.constant 0 : index
    %c0_53 = arith.constant 0 : index
    %57 = vector.load %arg19[%c0_52, %c0_53] : memref<10x80xbf16, #tpu.memory_space<vmem>>, vector<10x80xbf16>
    %58 = arith.extf %57 : vector<10x80xbf16> to vector<10x80xf32>
    %c0_54 = arith.constant 0 : index
    %c0_55 = arith.constant 0 : index
    %59 = vector.load %arg20[%c0_54, %c0_55] : memref<80x16xbf16, #tpu.memory_space<vmem>>, vector<80x16xbf16>
    %60 = arith.extf %59 : vector<80x16xbf16> to vector<80x16xf32>
    %61 = vector.broadcast %56 : vector<1x80xf32> to vector<10x80xf32>
    %62 = arith.addf %55, %61 : vector<10x80xf32>
    %63 = arith.mulf %58, %62 : vector<10x80xf32>
    %cst_56 = arith.constant dense<0.000000e+00> : vector<10x16xf32>
    %64 = tpu.matmul %63, %60, %cst_56 {dimension_numbers = #tpu.dot_dimension_numbers<[1], [0], [0], [1], [0, 0, 1, 1], [], []>} : vector<10x80xf32>, vector<80x16xf32>, vector<10x16xf32> -> vector<10x16xf32>
    %cst_57 = arith.constant 0.000000e+00 : f32
    %65 = vector.broadcast %cst_57 : f32 to vector<10x16xf32>
    %66 = arith.maximumf %64, %65 : vector<10x16xf32>
    %c0_58 = arith.constant 0 : index
    %c0_59 = arith.constant 0 : index
    %67 = vector.load %arg21[%c0_58, %c0_59] : memref<16x40xf32, #tpu.memory_space<vmem>>, vector<16x40xf32>
    %cst_60 = arith.constant dense<0.000000e+00> : vector<10x40xf32>
    %68 = tpu.matmul %66, %67, %cst_60 {dimension_numbers = #tpu.dot_dimension_numbers<[1], [0], [0], [1], [0, 0, 1, 1], [], []>} : vector<10x16xf32>, vector<16x40xf32>, vector<10x40xf32> -> vector<10x40xf32>
    %c0_61 = arith.constant 0 : index
    %c0_62 = arith.constant 0 : index
    %69 = vector.load %arg22[%c0_61, %c0_62] : memref<1x40xf32, #tpu.memory_space<vmem>>, vector<1x40xf32>
    %c0_63 = arith.constant 0 : index
    %c0_64 = arith.constant 0 : index
    %70 = vector.load %arg23[%c0_63, %c0_64] : memref<10x40xbf16, #tpu.memory_space<vmem>>, vector<10x40xbf16>
    %71 = arith.extf %70 : vector<10x40xbf16> to vector<10x40xf32>
    %c0_65 = arith.constant 0 : index
    %c0_66 = arith.constant 0 : index
    %72 = vector.load %arg24[%c0_65, %c0_66] : memref<40x8xbf16, #tpu.memory_space<vmem>>, vector<40x8xbf16>
    %73 = arith.extf %72 : vector<40x8xbf16> to vector<40x8xf32>
    %74 = vector.broadcast %69 : vector<1x40xf32> to vector<10x40xf32>
    %75 = arith.addf %68, %74 : vector<10x40xf32>
    %76 = arith.mulf %71, %75 : vector<10x40xf32>
    %cst_67 = arith.constant dense<0.000000e+00> : vector<10x8xf32>
    %77 = tpu.matmul %76, %73, %cst_67 {dimension_numbers = #tpu.dot_dimension_numbers<[1], [0], [0], [1], [0, 0, 1, 1], [], []>} : vector<10x40xf32>, vector<40x8xf32>, vector<10x8xf32> -> vector<10x8xf32>
    %cst_68 = arith.constant dense<0.000000e+00> : vector<8x8xf32>
    %78 = tpu.matmul %4, %77, %cst_68 {dimension_numbers = #tpu.dot_dimension_numbers<[0], [0], [1], [1], [0, 1, 1, 1], [], []>} : vector<10x8xf32>, vector<10x8xf32>, vector<8x8xf32> -> vector<8x8xf32>
    %c0_69 = arith.constant 0 : index
    %c0_70 = arith.constant 0 : index
    %79 = vector.load %arg25[%c0_69, %c0_70] : memref<16x32xf32, #tpu.memory_space<vmem>>, vector<16x32xf32>
    %c0_71 = arith.constant 0 : index
    %c0_72 = arith.constant 0 : index
    %80 = vector.load %arg26[%c0_71, %c0_72] : memref<1x32xf32, #tpu.memory_space<vmem>>, vector<1x32xf32>
    %c0_73 = arith.constant 0 : index
    %c0_74 = arith.constant 0 : index
    %81 = vector.load %arg27[%c0_73, %c0_74] : memref<8x32xbf16, #tpu.memory_space<vmem>>, vector<8x32xbf16>
    %82 = arith.extf %81 : vector<8x32xbf16> to vector<8x32xf32>
    %c0_75 = arith.constant 0 : index
    %c0_76 = arith.constant 0 : index
    %83 = vector.load %arg28[%c0_75, %c0_76] : memref<32x8xbf16, #tpu.memory_space<vmem>>, vector<32x8xbf16>
    %84 = arith.extf %83 : vector<32x8xbf16> to vector<32x8xf32>
    %cst_77 = arith.constant dense<0.000000e+00> : vector<8x32xf32>
    %85 = tpu.matmul %48, %79, %cst_77 {dimension_numbers = #tpu.dot_dimension_numbers<[1], [0], [0], [1], [0, 0, 1, 1], [], []>} : vector<8x16xf32>, vector<16x32xf32>, vector<8x32xf32> -> vector<8x32xf32>
    %86 = vector.broadcast %80 : vector<1x32xf32> to vector<8x32xf32>
    %87 = arith.addf %85, %86 : vector<8x32xf32>
    %88 = arith.mulf %82, %87 : vector<8x32xf32>
    %cst_78 = arith.constant dense<0.000000e+00> : vector<8x8xf32>
    %89 = tpu.matmul %88, %84, %cst_78 {dimension_numbers = #tpu.dot_dimension_numbers<[1], [0], [0], [1], [0, 0, 1, 1], [], []>} : vector<8x32xf32>, vector<32x8xf32>, vector<8x8xf32> -> vector<8x8xf32>
    %90 = arith.addf %78, %89 : vector<8x8xf32>
    %c0_79 = arith.constant 0 : index
    %c0_80 = arith.constant 0 : index
    %91 = vector.load %arg29[%c0_79, %c0_80] : memref<8x8xf32, #tpu.memory_space<vmem>>, vector<8x8xf32>
    tpu.vector_store %arg29[%c0_79, %c0_80], %90 {strides = array<i32>} : memref<8x8xf32, #tpu.memory_space<vmem>>, vector<8x8xf32>,
    return
  }
}

</mosaic_0001>

<llo_original>
// kernel: tpu_custom_call.1
$region0: #{tpu_custom_call.1}
  #allocation0 [shape = 'u32[]', space=smem, size = 0x4, offset = 0x4, fixed_abs, tag = 'smem constant byte address 0x4 - core index']
  #allocation1 [shape = 'u32[144,128]{1,0:T(1,128)}', space=vmem, size = 0x12000, scoped, tag = 'internal scratch']
  %s0 = inlined_call_operand.smem [shape: u32[30], index: -1, kind: input, shape index: {}]
  %s1 = sld [smem:[%s0]]
  %s2 = scalar_lea.smem %s0, 1
  %s3 = sld [smem:[%s2]]
  %s4 = scalar_lea.smem %s0, 2
  %s5 = sld [smem:[%s4]]
  %s6 = scalar_lea.smem %s0, 3
  %s7 = sld [smem:[%s6]]
  %s8 = scalar_lea.smem %s0, 4
  %s9 = sld [smem:[%s8]]
  %s10 = scalar_lea.smem %s0, 5
  %s11 = sld [smem:[%s10]]
  %s12 = scalar_lea.smem %s0, 6
  %s13 = sld [smem:[%s12]]
  %s14 = scalar_lea.smem %s0, 7
  %s15 = sld [smem:[%s14]]
  %s16 = scalar_lea.smem %s0, 8
  %s17 = sld [smem:[%s16]]
  %s18 = scalar_lea.smem %s0, 9
  %s19 = sld [smem:[%s18]]
  %s20 = scalar_lea.smem %s0, 10
  %s21 = sld [smem:[%s20]]
  %s22 = scalar_lea.smem %s0, 11
  %s23 = sld [smem:[%s22]]
  %s24 = scalar_lea.smem %s0, 12
  %s25 = sld [smem:[%s24]]
  %s26 = scalar_lea.smem %s0, 13
  %s27 = sld [smem:[%s26]]
  %s28 = scalar_lea.smem %s0, 14
  %s29 = sld [smem:[%s28]]
  %s30 = scalar_lea.smem %s0, 15
  %s31 = sld [smem:[%s30]]
  %s32 = scalar_lea.smem %s0, 16
  %s33 = sld [smem:[%s32]]
  %s34 = scalar_lea.smem %s0, 17
  %s35 = sld [smem:[%s34]]
  %s36 = scalar_lea.smem %s0, 18
  %s37 = sld [smem:[%s36]]
  %s38 = scalar_lea.smem %s0, 19
  %s39 = sld [smem:[%s38]]
  %s40 = scalar_lea.smem %s0, 20
  %s41 = sld [smem:[%s40]]
  %s42 = scalar_lea.smem %s0, 21
  %s43 = sld [smem:[%s42]]
  %s44 = scalar_lea.smem %s0, 22
  %s45 = sld [smem:[%s44]]
  %s46 = scalar_lea.smem %s0, 23
  %s47 = sld [smem:[%s46]]
  %s48 = scalar_lea.smem %s0, 24
  %s49 = sld [smem:[%s48]]
  %s50 = scalar_lea.smem %s0, 25
  %s51 = sld [smem:[%s50]]
  %s52 = scalar_lea.smem %s0, 26
  %s53 = sld [smem:[%s52]]
  %s54 = scalar_lea.smem %s0, 27
  %s55 = sld [smem:[%s54]]
  %s56 = scalar_lea.smem %s0, 28
  %s57 = sld [smem:[%s56]]
  %s58 = scalar_lea.smem %s0, 29
  %s59 = sld [smem:[%s58]]
  %s60 = sld [smem:[#allocation0]]
  $region126: #{tpu_custom_call.1} parent=0
    _
  %s62 = ssub.s32 1, %s60
  %s63 = scalar_select 0, %s62, %s60
  $region1: #{tpu_custom_call.1} parent=0
    #allocation2 [shape = 'u8[4096]{0}', space=vmem, size = 0x1000, scoped, tag = 'output window, operand 0, single buffered']
    #allocation3 [shape = 's32[1]{0}', space=sflag, size = 0x4, scoped, tag = 'scoped memory for tpu_custom_call.1']
    %64 = vsyncpa [#allocation3], 0
    // Predicated region
    $region2: #{tpu_custom_call.1} parent=1 // pred_check
      _
    $region3: #{tpu_custom_call.1} parent=1 // pred_check_branch
      %66 = sbr.rel (0) target = $region5
    $region4: #{tpu_custom_call.1} parent=1 // pred_region
      _
    $region5: #{tpu_custom_call.1} parent=1 // pred_fallthru
      _
    // Predicated region
    $region6: #{tpu_custom_call.1} parent=1 // pred_check
      _
    $region7: #{tpu_custom_call.1} parent=1 // pred_check_branch
      %68 = sbr.rel (0) target = $region9
    $region8: #{tpu_custom_call.1} parent=1 // pred_region
      _
    $region9: #{tpu_custom_call.1} parent=1 // pred_fallthru
      _
    // Predicated region
    $region10: #{tpu_custom_call.1} parent=1 // pred_check
      _
    $region11: #{tpu_custom_call.1} parent=1 // pred_check_branch
      %70 = sbr.rel (0) target = $region13
    $region12: #{tpu_custom_call.1} parent=1 // pred_region
      _
    $region13: #{tpu_custom_call.1} parent=1 // pred_fallthru
      _
    // Predicated region
    $region14: #{tpu_custom_call.1} parent=1 // pred_check
      _
    $region15: #{tpu_custom_call.1} parent=1 // pred_check_branch
      %72 = sbr.rel (0) target = $region17
    $region16: #{tpu_custom_call.1} parent=1 // pred_region
      _
    $region17: #{tpu_custom_call.1} parent=1 // pred_fallthru
      _
    // Predicated region
    $region18: #{tpu_custom_call.1} parent=1 // pred_check
      _
    $region19: #{tpu_custom_call.1} parent=1 // pred_check_branch
      %74 = sbr.rel (0) target = $region21
    $region20: #{tpu_custom_call.1} parent=1 // pred_region
      _
    $region21: #{tpu_custom_call.1} parent=1 // pred_fallthru
      _
    // Predicated region
    $region22: #{tpu_custom_call.1} parent=1 // pred_check
      _
    $region23: #{tpu_custom_call.1} parent=1 // pred_check_branch
      %76 = sbr.rel (0) target = $region25
    $region24: #{tpu_custom_call.1} parent=1 // pred_region
      _
    $region25: #{tpu_custom_call.1} parent=1 // pred_fallthru
      _
    // Predicated region
    $region26: #{tpu_custom_call.1} parent=1 // pred_check
      _
    $region27: #{tpu_custom_call.1} parent=1 // pred_check_branch
      %78 = sbr.rel (0) target = $region29
    $region28: #{tpu_custom_call.1} parent=1 // pred_region
      _
    $region29: #{tpu_custom_call.1} parent=1 // pred_fallthru
      _
    // Predicated region
    $region30: #{tpu_custom_call.1} parent=1 // pred_check
      _
    $region31: #{tpu_custom_call.1} parent=1 // pred_check_branch
      %80 = sbr.rel (0) target = $region33
    $region32: #{tpu_custom_call.1} parent=1 // pred_region
      _
    $region33: #{tpu_custom_call.1} parent=1 // pred_fallthru
      _
    // Predicated region
    $region34: #{tpu_custom_call.1} parent=1 // pred_check
      _
    $region35: #{tpu_custom_call.1} parent=1 // pred_check_branch
      %82 = sbr.rel (0) target = $region37
    $region36: #{tpu_custom_call.1} parent=1 // pred_region
      _
    $region37: #{tpu_custom_call.1} parent=1 // pred_fallthru
      _
    // Predicated region
    $region38: #{tpu_custom_call.1} parent=1 // pred_check
      _
    $region39: #{tpu_custom_call.1} parent=1 // pred_check_branch
      %84 = sbr.rel (0) target = $region41
    $region40: #{tpu_custom_call.1} parent=1 // pred_region
      _
    $region41: #{tpu_custom_call.1} parent=1 // pred_fallthru
      _
    // Predicated region
    $region42: #{tpu_custom_call.1} parent=1 // pred_check
      _
    $region43: #{tpu_custom_call.1} parent=1 // pred_check_branch
      %86 = sbr.rel (0) target = $region45
    $region44: #{tpu_custom_call.1} parent=1 // pred_region
      _
    $region45: #{tpu_custom_call.1} parent=1 // pred_fallthru
      _
    // Predicated region
    $region46: #{tpu_custom_call.1} parent=1 // pred_check
      _
    $region47: #{tpu_custom_call.1} parent=1 // pred_check_branch
      %88 = sbr.rel (0) target = $region49
    $region48: #{tpu_custom_call.1} parent=1 // pred_region
      _
    $region49: #{tpu_custom_call.1} parent=1 // pred_fallthru
      _
    // Predicated region
    $region50: #{tpu_custom_call.1} parent=1 // pred_check
      _
    $region51: #{tpu_custom_call.1} parent=1 // pred_check_branch
      %90 = sbr.rel (0) target = $region53
    $region52: #{tpu_custom_call.1} parent=1 // pred_region
      _
    $region53: #{tpu_custom_call.1} parent=1 // pred_fallthru
      _
    // Predicated region
    $region54: #{tpu_custom_call.1} parent=1 // pred_check
      _
    $region55: #{tpu_custom_call.1} parent=1 // pred_check_branch
      %92 = sbr.rel (0) target = $region57
    $region56: #{tpu_custom_call.1} parent=1 // pred_region
      _
    $region57: #{tpu_custom_call.1} parent=1 // pred_fallthru
      _
    // Predicated region
    $region58: #{tpu_custom_call.1} parent=1 // pred_check
      _
    $region59: #{tpu_custom_call.1} parent=1 // pred_check_branch
      %94 = sbr.rel (0) target = $region61
    $region60: #{tpu_custom_call.1} parent=1 // pred_region
      _
    $region61: #{tpu_custom_call.1} parent=1 // pred_fallthru
      _
    // Predicated region
    $region62: #{tpu_custom_call.1} parent=1 // pred_check
      _
    $region63: #{tpu_custom_call.1} parent=1 // pred_check_branch
      %96 = sbr.rel (0) target = $region65
    $region64: #{tpu_custom_call.1} parent=1 // pred_region
      _
    $region65: #{tpu_custom_call.1} parent=1 // pred_fallthru
      _
    // Predicated region
    $region66: #{tpu_custom_call.1} parent=1 // pred_check
      _
    $region67: #{tpu_custom_call.1} parent=1 // pred_check_branch
      %98 = sbr.rel (0) target = $region69
    $region68: #{tpu_custom_call.1} parent=1 // pred_region
      _
    $region69: #{tpu_custom_call.1} parent=1 // pred_fallthru
      _
    // Predicated region
    $region70: #{tpu_custom_call.1} parent=1 // pred_check
      _
    $region71: #{tpu_custom_call.1} parent=1 // pred_check_branch
      %100 = sbr.rel (0) target = $region73
    $region72: #{tpu_custom_call.1} parent=1 // pred_region
      _
    $region73: #{tpu_custom_call.1} parent=1 // pred_fallthru
      _
    // Predicated region
    $region74: #{tpu_custom_call.1} parent=1 // pred_check
      _
    $region75: #{tpu_custom_call.1} parent=1 // pred_check_branch
      %102 = sbr.rel (0) target = $region77
    $region76: #{tpu_custom_call.1} parent=1 // pred_region
      _
    $region77: #{tpu_custom_call.1} parent=1 // pred_fallthru
      _
    // Predicated region
    $region78: #{tpu_custom_call.1} parent=1 // pred_check
      _
    $region79: #{tpu_custom_call.1} parent=1 // pred_check_branch
      %104 = sbr.rel (0) target = $region81
    $region80: #{tpu_custom_call.1} parent=1 // pred_region
      _
    $region81: #{tpu_custom_call.1} parent=1 // pred_fallthru
      _
    // Predicated region
    $region82: #{tpu_custom_call.1} parent=1 // pred_check
      _
    $region83: #{tpu_custom_call.1} parent=1 // pred_check_branch
      %106 = sbr.rel (0) target = $region85
    $region84: #{tpu_custom_call.1} parent=1 // pred_region
      _
    $region85: #{tpu_custom_call.1} parent=1 // pred_fallthru
      _
    // Predicated region
    $region86: #{tpu_custom_call.1} parent=1 // pred_check
      _
    $region87: #{tpu_custom_call.1} parent=1 // pred_check_branch
      %108 = sbr.rel (0) target = $region89
    $region88: #{tpu_custom_call.1} parent=1 // pred_region
      _
    $region89: #{tpu_custom_call.1} parent=1 // pred_fallthru
      _
    // Predicated region
    $region90: #{tpu_custom_call.1} parent=1 // pred_check
      _
    $region91: #{tpu_custom_call.1} parent=1 // pred_check_branch
      %110 = sbr.rel (0) target = $region93
    $region92: #{tpu_custom_call.1} parent=1 // pred_region
      _
    $region93: #{tpu_custom_call.1} parent=1 // pred_fallthru
      _
    // Predicated region
    $region94: #{tpu_custom_call.1} parent=1 // pred_check
      _
    $region95: #{tpu_custom_call.1} parent=1 // pred_check_branch
      %112 = sbr.rel (0) target = $region97
    $region96: #{tpu_custom_call.1} parent=1 // pred_region
      _
    $region97: #{tpu_custom_call.1} parent=1 // pred_fallthru
      _
    // Predicated region
    $region98: #{tpu_custom_call.1} parent=1 // pred_check
      _
    $region99: #{tpu_custom_call.1} parent=1 // pred_check_branch
      %114 = sbr.rel (0) target = $region101
    $region100: #{tpu_custom_call.1} parent=1 // pred_region
      _
    $region101: #{tpu_custom_call.1} parent=1 // pred_fallthru
      _
    // Predicated region
    $region102: #{tpu_custom_call.1} parent=1 // pred_check
      _
    $region103: #{tpu_custom_call.1} parent=1 // pred_check_branch
      %116 = sbr.rel (0) target = $region105
    $region104: #{tpu_custom_call.1} parent=1 // pred_region
      _
    $region105: #{tpu_custom_call.1} parent=1 // pred_fallthru
      _
    // Predicated region
    $region106: #{tpu_custom_call.1} parent=1 // pred_check
      _
    $region107: #{tpu_custom_call.1} parent=1 // pred_check_branch
      %118 = sbr.rel (0) target = $region109
    $region108: #{tpu_custom_call.1} parent=1 // pred_region
      _
    $region109: #{tpu_custom_call.1} parent=1 // pred_fallthru
      _
    // Predicated region
    $region110: #{tpu_custom_call.1} parent=1 // pred_check
      _
    $region111: #{tpu_custom_call.1} parent=1 // pred_check_branch
      %120 = sbr.rel (0) target = $region113
    $region112: #{tpu_custom_call.1} parent=1 // pred_region
      _
    $region113: #{tpu_custom_call.1} parent=1 // pred_fallthru
      _
    // Predicated region
    $region114: #{tpu_custom_call.1} parent=1 // pred_check
      _
    $region115: #{tpu_custom_call.1} parent=1 // pred_check_branch
      %122 = sbr.rel (0) target = $region117
    $region116: #{tpu_custom_call.1} parent=1 // pred_region
      _
    $region117: #{tpu_custom_call.1} parent=1 // pred_fallthru
      _
    %v123 = vld [vmem:[%s1] sm:$0xff]
    %v124 = vld [vmem:[%s3] sm:$0xf]
    %v125 = vld [vmem:[%s3 + $0x4] sm:$0x1]
    %v126 = vunpack.c.l.bf16 %v124
    %v127 = vunpack.c.l.bf16 %v125
    %v128 = vld [vmem:[%s5] sm:$0xf]
    %v129 = vld [vmem:[%s5 + $0x4] sm:$0x1]
    %v130 = vunpack.c.l.bf16 %v128
    %v131 = vunpack.c.l.bf16 %v129
    %vm132 = vcmask 64512
    %v134 = vsel %vm132, %v126, 0
    %v137 = vsel %vm132, %v127, 0
    %139 = vmatprep.subr.mxu0 0.0
    %140 = vmatpush1.msra.mxu0 0.0
    %141 = vmatprep.subr.mxu0 0.0
    %142 = vmatpush1.msra.mxu0 0.0
    %143 = vmatprep.subr.mxu0 0.0
    %144 = vmatpush1.msra.mxu0 0.0
    %145 = vmatprep.subr.mxu0 0.0
    %146 = vmatpush1.msra.mxu0 0.0
    %147 = vmatprep.subr.mxu0 0.0
    %148 = vmatpush1.msra.mxu0 0.0
    %149 = vmatprep.subr.mxu0 0.0
    %150 = vmatpush1.msra.mxu0 0.0
    %151 = vmatprep.subr.mxu0 0.0
    %152 = vmatpush1.msra.mxu0 0.0
    %153 = vmatprep.subr.mxu0 0.0
    %154 = vmatpush1.msra.mxu0 0.0
    %155 = vmatprep.subr.mxu0 0.0
    %156 = vmatpush1.msra.mxu0 0.0
    %157 = vmatprep.subr.mxu0 0.0
    %158 = vmatpush1.msra.mxu0 0.0
    %159 = vmatprep.subr.mxu0 0.0
    %160 = vmatpush1.msra.mxu0 0.0
    %161 = vmatprep.subr.mxu0 0.0
    %162 = vmatpush1.msra.mxu0 0.0
    %163 = vmatprep.subr.mxu0 0.0
    %164 = vmatpush1.msra.mxu0 0.0
    %165 = vmatprep.subr.mxu0 0.0
    %166 = vmatpush1.msra.mxu0 0.0
    %167 = vmatprep.subr.mxu0 0.0
    %168 = vmatpush1.msra.mxu0 0.0
    %169 = vmatprep.subr.mxu0 0.0
    %170 = vmatpush1.msra.mxu0 %v123
    %171 = vmatprep.subr.mxu0 0.0
    %172 = vmatpush2.msra.mxu0 0.0
    %173 = vmatprep.subr.mxu0 0.0
    %174 = vmatpush2.msra.mxu0 0.0
    %175 = vmatprep.subr.mxu0 0.0
    %176 = vmatpush2.msra.mxu0 0.0
    %177 = vmatprep.subr.mxu0 0.0
    %178 = vmatpush2.msra.mxu0 0.0
    %179 = vmatprep.subr.mxu0 0.0
    %180 = vmatpush2.msra.mxu0 0.0
    %181 = vmatprep.subr.mxu0 0.0
    %182 = vmatpush2.msra.mxu0 0.0
    %183 = vmatprep.subr.mxu0 0.0
    %184 = vmatpush2.msra.mxu0 0.0
    %185 = vmatprep.subr.mxu0 0.0
    %186 = vmatpush2.msra.mxu0 0.0
    %187 = vmatprep.subr.mxu0 0.0
    %188 = vmatpush2.msra.mxu0 0.0
    %189 = vmatprep.subr.mxu0 0.0
    %190 = vmatpush2.msra.mxu0 0.0
    %191 = vmatprep.subr.mxu0 0.0
    %192 = vmatpush2.msra.mxu0 0.0
    %193 = vmatprep.subr.mxu0 0.0
    %194 = vmatpush2.msra.mxu0 0.0
    %195 = vmatprep.subr.mxu0 0.0
    %196 = vmatpush2.msra.mxu0 0.0
    %197 = vmatprep.subr.mxu0 0.0
    %198 = vmatpush2.msra.mxu0 0.0
    %199 = vmatprep.subr.mxu0 0.0
    %200 = vmatpush2.msra.mxu0 0.0
    %201 = vmatprep.subr.mxu0 0.0
    %202 = vmatpush2.msra.mxu0 0.0
    %203 = vmatprep.mubr.f32.mxu0 0.0
    %204 = vmatmul.mubr.f32.gmra.mxu0 %v134
    %v205 = vpop.f32.mrf.mxu0
    %v206 = vadd.f32 0.0, %v205
    %v207 = vpop.f32.mrf.mxu0
    %208 = vmatprep.mubr.f32.mxu0 0.0
    %209 = vmatmul.mubr.f32.gmra.mxu0 %v137
    %v210 = vpop.f32.mrf.mxu0
    %v211 = vadd.f32 0.0, %v210
    %v212 = vpop.f32.mrf.mxu0
    %213 = vdwg.mxu0
    %v215 = vsel %vm132, %v130, 0
    %v218 = vsel %vm132, %v131, 0
    %220 = vmatprep.subr.mxu0 0.0
    %221 = vmatpush1.msra.mxu0 0.0
    %222 = vmatprep.subr.mxu0 0.0
    %223 = vmatpush1.msra.mxu0 0.0
    %224 = vmatprep.subr.mxu0 0.0
    %225 = vmatpush1.msra.mxu0 0.0
    %226 = vmatprep.subr.mxu0 0.0
    %227 = vmatpush1.msra.mxu0 0.0
    %228 = vmatprep.subr.mxu0 0.0
    %229 = vmatpush1.msra.mxu0 0.0
    %230 = vmatprep.subr.mxu0 0.0
    %231 = vmatpush1.msra.mxu0 0.0
    %232 = vmatprep.subr.mxu0 0.0
    %233 = vmatpush1.msra.mxu0 0.0
    %234 = vmatprep.subr.mxu0 0.0
    %235 = vmatpush1.msra.mxu0 0.0
    %236 = vmatprep.subr.mxu0 0.0
    %237 = vmatpush1.msra.mxu0 0.0
    %238 = vmatprep.subr.mxu0 0.0
    %239 = vmatpush1.msra.mxu0 0.0
    %240 = vmatprep.subr.mxu0 0.0
    %241 = vmatpush1.msra.mxu0 0.0
    %242 = vmatprep.subr.mxu0 0.0
    %243 = vmatpush1.msra.mxu0 0.0
    %244 = vmatprep.subr.mxu0 0.0
    %245 = vmatpush1.msra.mxu0 0.0
    %246 = vmatprep.subr.mxu0 0.0
    %247 = vmatpush1.msra.mxu0 0.0
    %248 = vmatprep.subr.mxu0 0.0
    %249 = vmatpush1.msra.mxu0 0.0
    %250 = vmatprep.subr.mxu0 0.0
    %251 = vmatpush1.msra.mxu0 %v123
    %252 = vmatprep.subr.mxu0 0.0
    %253 = vmatpush2.msra.mxu0 0.0
    %254 = vmatprep.subr.mxu0 0.0
    %255 = vmatpush2.msra.mxu0 0.0
    %256 = vmatprep.subr.mxu0 0.0
    %257 = vmatpush2.msra.mxu0 0.0
    %258 = vmatprep.subr.mxu0 0.0
    %259 = vmatpush2.msra.mxu0 0.0
    %260 = vmatprep.subr.mxu0 0.0
    %261 = vmatpush2.msra.mxu0 0.0
    %262 = vmatprep.subr.mxu0 0.0
    %263 = vmatpush2.msra.mxu0 0.0
    %264 = vmatprep.subr.mxu0 0.0
    %265 = vmatpush2.msra.mxu0 0.0
    %266 = vmatprep.subr.mxu0 0.0
    %267 = vmatpush2.msra.mxu0 0.0
    %268 = vmatprep.subr.mxu0 0.0
    %269 = vmatpush2.msra.mxu0 0.0
    %270 = vmatprep.subr.mxu0 0.0
    %271 = vmatpush2.msra.mxu0 0.0
    %272 = vmatprep.subr.mxu0 0.0
    %273 = vmatpush2.msra.mxu0 0.0
    %274 = vmatprep.subr.mxu0 0.0
    %275 = vmatpush2.msra.mxu0 0.0
    %276 = vmatprep.subr.mxu0 0.0
    %277 = vmatpush2.msra.mxu0 0.0
    %278 = vmatprep.subr.mxu0 0.0
    %279 = vmatpush2.msra.mxu0 0.0
    %280 = vmatprep.subr.mxu0 0.0
    %281 = vmatpush2.msra.mxu0 0.0
    %282 = vmatprep.subr.mxu0 0.0
    %283 = vmatpush2.msra.mxu0 0.0
    %284 = vmatprep.mubr.f32.mxu0 0.0
    %285 = vmatmul.mubr.f32.gmra.mxu0 %v215
    %v286 = vpop.f32.mrf.mxu0
    %v287 = vadd.f32 0.0, %v286
    %v288 = vpop.f32.mrf.mxu0
    %289 = vmatprep.mubr.f32.mxu0 0.0
    %290 = vmatmul.mubr.f32.gmra.mxu0 %v218
    %v291 = vpop.f32.mrf.mxu0
    %v292 = vadd.f32 0.0, %v291
    %v293 = vpop.f32.mrf.mxu0
    %294 = vdwg.mxu0
    %v295 = vld [vmem:[%s7] sm:$0xff]
    %v296 = vld [vmem:[%s9] sm:$0xff]
    %v298 = vsel %vm132, %v206, 0
    %v301 = vsel %vm132, %v211, 0
    %303 = vmatprep.subr.mxu0 0.0
    %304 = vmatpush1.msra.mxu0 0.0
    %305 = vmatprep.subr.mxu0 0.0
    %306 = vmatpush1.msra.mxu0 0.0
    %307 = vmatprep.subr.mxu0 0.0
    %308 = vmatpush1.msra.mxu0 0.0
    %309 = vmatprep.subr.mxu0 0.0
    %310 = vmatpush1.msra.mxu0 0.0
    %311 = vmatprep.subr.mxu0 0.0
    %312 = vmatpush1.msra.mxu0 0.0
    %313 = vmatprep.subr.mxu0 0.0
    %314 = vmatpush1.msra.mxu0 0.0
    %315 = vmatprep.subr.mxu0 0.0
    %316 = vmatpush1.msra.mxu0 0.0
    %317 = vmatprep.subr.mxu0 0.0
    %318 = vmatpush1.msra.mxu0 0.0
    %319 = vmatprep.subr.mxu0 0.0
    %320 = vmatpush1.msra.mxu0 0.0
    %321 = vmatprep.subr.mxu0 0.0
    %322 = vmatpush1.msra.mxu0 0.0
    %323 = vmatprep.subr.mxu0 0.0
    %324 = vmatpush1.msra.mxu0 0.0
    %325 = vmatprep.subr.mxu0 0.0
    %326 = vmatpush1.msra.mxu0 0.0
    %327 = vmatprep.subr.mxu0 0.0
    %328 = vmatpush1.msra.mxu0 0.0
    %329 = vmatprep.subr.mxu0 0.0
    %330 = vmatpush1.msra.mxu0 0.0
    %331 = vmatprep.subr.mxu0 0.0
    %332 = vmatpush1.msra.mxu0 0.0
    %333 = vmatprep.subr.mxu0 0.0
    %334 = vmatpush1.msra.mxu0 %v296
    %335 = vmatprep.subr.mxu0 0.0
    %336 = vmatpush2.msra.mxu0 0.0
    %337 = vmatprep.subr.mxu0 0.0
    %338 = vmatpush2.msra.mxu0 0.0
    %339 = vmatprep.subr.mxu0 0.0
    %340 = vmatpush2.msra.mxu0 0.0
    %341 = vmatprep.subr.mxu0 0.0
    %342 = vmatpush2.msra.mxu0 0.0
    %343 = vmatprep.subr.mxu0 0.0
    %344 = vmatpush2.msra.mxu0 0.0
    %345 = vmatprep.subr.mxu0 0.0
    %346 = vmatpush2.msra.mxu0 0.0
    %347 = vmatprep.subr.mxu0 0.0
    %348 = vmatpush2.msra.mxu0 0.0
    %349 = vmatprep.subr.mxu0 0.0
    %350 = vmatpush2.msra.mxu0 0.0
    %351 = vmatprep.subr.mxu0 0.0
    %352 = vmatpush2.msra.mxu0 0.0
    %353 = vmatprep.subr.mxu0 0.0
    %354 = vmatpush2.msra.mxu0 0.0
    %355 = vmatprep.subr.mxu0 0.0
    %356 = vmatpush2.msra.mxu0 0.0
    %357 = vmatprep.subr.mxu0 0.0
    %358 = vmatpush2.msra.mxu0 0.0
    %359 = vmatprep.subr.mxu0 0.0
    %360 = vmatpush2.msra.mxu0 0.0
    %361 = vmatprep.subr.mxu0 0.0
    %362 = vmatpush2.msra.mxu0 0.0
    %363 = vmatprep.subr.mxu0 0.0
    %364 = vmatpush2.msra.mxu0 0.0
    %365 = vmatprep.subr.mxu0 0.0
    %366 = vmatpush2.msra.mxu0 0.0
    %367 = vmatprep.mubr.f32.mxu0 0.0
    %368 = vmatmul.mubr.f32.gmra.mxu0 %v298
    %v369 = vpop.f32.mrf.mxu0
    %v370 = vadd.f32 0.0, %v369
    %v371 = vpop.f32.mrf.mxu0
    %372 = vmatprep.mubr.f32.mxu0 0.0
    %373 = vmatmul.mubr.f32.gmra.mxu0 %v301
    %v374 = vpop.f32.mrf.mxu0
    %v375 = vadd.f32 0.0, %v374
    %v376 = vpop.f32.mrf.mxu0
    %377 = vdwg.mxu0
    %v379 = vsel %vm132, %v287, 0
    %v382 = vsel %vm132, %v292, 0
    %384 = vmatprep.subr.mxu0 0.0
    %385 = vmatpush1.msra.mxu0 0.0
    %386 = vmatprep.subr.mxu0 0.0
    %387 = vmatpush1.msra.mxu0 0.0
    %388 = vmatprep.subr.mxu0 0.0
    %389 = vmatpush1.msra.mxu0 0.0
    %390 = vmatprep.subr.mxu0 0.0
    %391 = vmatpush1.msra.mxu0 0.0
    %392 = vmatprep.subr.mxu0 0.0
    %393 = vmatpush1.msra.mxu0 0.0
    %394 = vmatprep.subr.mxu0 0.0
    %395 = vmatpush1.msra.mxu0 0.0
    %396 = vmatprep.subr.mxu0 0.0
    %397 = vmatpush1.msra.mxu0 0.0
    %398 = vmatprep.subr.mxu0 0.0
    %399 = vmatpush1.msra.mxu0 0.0
    %400 = vmatprep.subr.mxu0 0.0
    %401 = vmatpush1.msra.mxu0 0.0
    %402 = vmatprep.subr.mxu0 0.0
    %403 = vmatpush1.msra.mxu0 0.0
    %404 = vmatprep.subr.mxu0 0.0
    %405 = vmatpush1.msra.mxu0 0.0
    %406 = vmatprep.subr.mxu0 0.0
    %407 = vmatpush1.msra.mxu0 0.0
    %408 = vmatprep.subr.mxu0 0.0
    %409 = vmatpush1.msra.mxu0 0.0
    %410 = vmatprep.subr.mxu0 0.0
    %411 = vmatpush1.msra.mxu0 0.0
    %412 = vmatprep.subr.mxu0 0.0
    %413 = vmatpush1.msra.mxu0 0.0
    %414 = vmatprep.subr.mxu0 0.0
    %415 = vmatpush1.msra.mxu0 %v295
    %416 = vmatprep.subr.mxu0 0.0
    %417 = vmatpush2.msra.mxu0 0.0
    %418 = vmatprep.subr.mxu0 0.0
    %419 = vmatpush2.msra.mxu0 0.0
    %420 = vmatprep.subr.mxu0 0.0
    %421 = vmatpush2.msra.mxu0 0.0
    %422 = vmatprep.subr.mxu0 0.0
    %423 = vmatpush2.msra.mxu0 0.0
    %424 = vmatprep.subr.mxu0 0.0
    %425 = vmatpush2.msra.mxu0 0.0
    %426 = vmatprep.subr.mxu0 0.0
    %427 = vmatpush2.msra.mxu0 0.0
    %428 = vmatprep.subr.mxu0 0.0
    %429 = vmatpush2.msra.mxu0 0.0
    %430 = vmatprep.subr.mxu0 0.0
    %431 = vmatpush2.msra.mxu0 0.0
    %432 = vmatprep.subr.mxu0 0.0
    %433 = vmatpush2.msra.mxu0 0.0
    %434 = vmatprep.subr.mxu0 0.0
    %435 = vmatpush2.msra.mxu0 0.0
    %436 = vmatprep.subr.mxu0 0.0
    %437 = vmatpush2.msra.mxu0 0.0
    %438 = vmatprep.subr.mxu0 0.0
    %439 = vmatpush2.msra.mxu0 0.0
    %440 = vmatprep.subr.mxu0 0.0
    %441 = vmatpush2.msra.mxu0 0.0
    %442 = vmatprep.subr.mxu0 0.0
    %443 = vmatpush2.msra.mxu0 0.0
    %444 = vmatprep.subr.mxu0 0.0
    %445 = vmatpush2.msra.mxu0 0.0
    %446 = vmatprep.subr.mxu0 0.0
    %447 = vmatpush2.msra.mxu0 0.0
    %448 = vmatprep.mubr.f32.mxu0 0.0
    %449 = vmatmul.mubr.f32.gmra.mxu0 %v379
    %v450 = vpop.f32.mrf.mxu0
    %v451 = vadd.f32 %v370, %v450
    %v452 = vpop.f32.mrf.mxu0
    %453 = vmatprep.mubr.f32.mxu0 0.0
    %454 = vmatmul.mubr.f32.gmra.mxu0 %v382
    %v455 = vpop.f32.mrf.mxu0
    %v456 = vadd.f32 %v375, %v455
    %v457 = vpop.f32.mrf.mxu0
    %458 = vdwg.mxu0
    %v459 = vld [vmem:[%s11] sm:$0x1]
    %v460 = vld [vmem:[%s13] sm:$0xf]
    %v461 = vld [vmem:[%s13 + $0x4] sm:$0x1]
    %v462 = vunpack.c.l.bf16 %v460
    %v463 = vunpack.c.l.bf16 %v461
    %v464 = vld [vmem:[%s15] sm:$0xf]
    %v465 = vld [vmem:[%s15 + $0x4] sm:$0xf]
    %v466 = vld [vmem:[%s15 + $0x8] sm:$0xf]
    %v467 = vld [vmem:[%s15 + $0xc] sm:$0xf]
    %v468 = vld [vmem:[%s15 + $0x10] sm:$0xf]
    %v469 = vld [vmem:[%s15 + $0x14] sm:$0xf]
    %v470 = vld [vmem:[%s15 + $0x18] sm:$0xf]
    %v471 = vld [vmem:[%s15 + $0x1c] sm:$0xf]
    %v472 = vld [vmem:[%s15 + $0x20] sm:$0xf]
    %v473 = vld [vmem:[%s15 + $0x24] sm:$0xf]
    %v474 = vunpack.c.l.bf16 %v464
    %v475 = vunpack.c.l.bf16 %v465
    %v476 = vunpack.c.l.bf16 %v466
    %v477 = vunpack.c.l.bf16 %v467
    %v478 = vunpack.c.l.bf16 %v468
    %v479 = vunpack.c.l.bf16 %v469
    %v480 = vunpack.c.l.bf16 %v470
    %v481 = vunpack.c.l.bf16 %v471
    %v482 = vunpack.c.l.bf16 %v472
    %v483 = vunpack.c.l.bf16 %v473
    %v485 = vlaneseq
    %v486 = vshrl.u32 %v485, 7
    %v487 = vsub.s32 0, %v486
    %v488 = vrot.slane %v459, %v487
    %v490 = vadd.f32 %v451, %v488
    %v491 = vadd.f32 %v456, %v488
    %v492 = vmul.f32 %v462, %v490
    %v493 = vmul.f32 %v463, %v491
    %vm494 = vcmask 654336
    %v496 = vsel %vm494, %v492, 0
    %v499 = vsel %vm494, %v493, 0
    %501 = vmatprep.subr.mxu0 0.0
    %502 = vmatpush1.msra.mxu0 0.0
    %503 = vmatprep.subr.mxu0 0.0
    %504 = vmatpush1.msra.mxu0 0.0
    %505 = vmatprep.subr.mxu0 0.0
    %506 = vmatpush1.msra.mxu0 0.0
    %507 = vmatprep.subr.mxu0 0.0
    %508 = vmatpush1.msra.mxu0 0.0
    %509 = vmatprep.subr.mxu0 0.0
    %510 = vmatpush1.msra.mxu0 0.0
    %511 = vmatprep.subr.mxu0 0.0
    %512 = vmatpush1.msra.mxu0 0.0
    %513 = vmatprep.subr.mxu0 0.0
    %514 = vmatpush1.msra.mxu0 %v483
    %515 = vmatprep.subr.mxu0 0.0
    %516 = vmatpush1.msra.mxu0 %v482
    %517 = vmatprep.subr.mxu0 0.0
    %518 = vmatpush1.msra.mxu0 %v481
    %519 = vmatprep.subr.mxu0 0.0
    %520 = vmatpush1.msra.mxu0 %v480
    %521 = vmatprep.subr.mxu0 0.0
    %522 = vmatpush1.msra.mxu0 %v479
    %523 = vmatprep.subr.mxu0 0.0
    %524 = vmatpush1.msra.mxu0 %v478
    %525 = vmatprep.subr.mxu0 0.0
    %526 = vmatpush1.msra.mxu0 %v477
    %527 = vmatprep.subr.mxu0 0.0
    %528 = vmatpush1.msra.mxu0 %v476
    %529 = vmatprep.subr.mxu0 0.0
    %530 = vmatpush1.msra.mxu0 %v475
    %531 = vmatprep.subr.mxu0 0.0
    %532 = vmatpush1.msra.mxu0 %v474
    %533 = vmatprep.subr.mxu0 0.0
    %534 = vmatpush2.msra.mxu0 0.0
    %535 = vmatprep.subr.mxu0 0.0
    %536 = vmatpush2.msra.mxu0 0.0
    %537 = vmatprep.subr.mxu0 0.0
    %538 = vmatpush2.msra.mxu0 0.0
    %539 = vmatprep.subr.mxu0 0.0
    %540 = vmatpush2.msra.mxu0 0.0
    %541 = vmatprep.subr.mxu0 0.0
    %542 = vmatpush2.msra.mxu0 0.0
    %543 = vmatprep.subr.mxu0 0.0
    %544 = vmatpush2.msra.mxu0 0.0
    %545 = vmatprep.subr.mxu0 0.0
    %546 = vmatpush2.msra.mxu0 0.0
    %547 = vmatprep.subr.mxu0 0.0
    %548 = vmatpush2.msra.mxu0 0.0
    %549 = vmatprep.subr.mxu0 0.0
    %550 = vmatpush2.msra.mxu0 0.0
    %551 = vmatprep.subr.mxu0 0.0
    %552 = vmatpush2.msra.mxu0 0.0
    %553 = vmatprep.subr.mxu0 0.0
    %554 = vmatpush2.msra.mxu0 0.0
    %555 = vmatprep.subr.mxu0 0.0
    %556 = vmatpush2.msra.mxu0 0.0
    %557 = vmatprep.subr.mxu0 0.0
    %558 = vmatpush2.msra.mxu0 0.0
    %559 = vmatprep.subr.mxu0 0.0
    %560 = vmatpush2.msra.mxu0 0.0
    %561 = vmatprep.subr.mxu0 0.0
    %562 = vmatpush2.msra.mxu0 0.0
    %563 = vmatprep.subr.mxu0 0.0
    %564 = vmatpush2.msra.mxu0 0.0
    %565 = vmatprep.mubr.f32.mxu0 0.0
    %566 = vmatmul.mubr.f32.gmra.mxu0 %v496
    %v567 = vpop.f32.mrf.mxu0
    %v568 = vadd.f32 0.0, %v567
    %v569 = vpop.f32.mrf.mxu0
    %570 = vmatprep.mubr.f32.mxu0 0.0
    %571 = vmatmul.mubr.f32.gmra.mxu0 %v499
    %v572 = vpop.f32.mrf.mxu0
    %v573 = vadd.f32 0.0, %v572
    %v574 = vpop.f32.mrf.mxu0
    %575 = vdwg.mxu0
    %v576 = vmax.f32 %v568, 0.0
    %v577 = vmax.f32 %v573, 0.0
    %v578 = vld [vmem:[%s17] sm:$0xff]
    %v579 = vld [vmem:[%s17 + $0x8] sm:$0xff]
    %v580 = vld [vmem:[%s19] sm:$0x1]
    %v581 = vld [vmem:[%s21] sm:$0xf]
    %v582 = vld [vmem:[%s21 + $0x4] sm:$0x1]
    %v583 = vunpack.c.l.bf16 %v581
    %v584 = vunpack.c.l.bf16 %v582
    %v585 = vld [vmem:[%s23] sm:$0xf]
    %v586 = vld [vmem:[%s23 + $0x4] sm:$0xf]
    %v587 = vld [vmem:[%s23 + $0x8] sm:$0xf]
    %v588 = vld [vmem:[%s23 + $0xc] sm:$0xf]
    %v589 = vld [vmem:[%s23 + $0x10] sm:$0xf]
    %v590 = vld [vmem:[%s23 + $0x14] sm:$0xf]
    %v591 = vld [vmem:[%s23 + $0x18] sm:$0xf]
    %v592 = vld [vmem:[%s23 + $0x1c] sm:$0xf]
    %v593 = vld [vmem:[%s23 + $0x20] sm:$0xf]
    %v594 = vld [vmem:[%s23 + $0x24] sm:$0xf]
    %v595 = vunpack.c.l.bf16 %v585
    %v596 = vunpack.c.l.bf16 %v586
    %v597 = vunpack.c.l.bf16 %v587
    %v598 = vunpack.c.l.bf16 %v588
    %v599 = vunpack.c.l.bf16 %v589
    %v600 = vunpack.c.l.bf16 %v590
    %v601 = vunpack.c.l.bf16 %v591
    %v602 = vunpack.c.l.bf16 %v592
    %v603 = vunpack.c.l.bf16 %v593
    %v604 = vunpack.c.l.bf16 %v594
    %v606 = vlaneseq
    %v607 = vshrl.u32 %v606, 7
    %v608 = vsub.s32 0, %v607
    %v609 = vrot.slane %v580, %v608
    %vm611 = vcmask 130048
    %v613 = vsel %vm611, %v576, 0
    %v616 = vsel %vm611, %v577, 0
    %618 = vmatprep.subr.mxu0 0.0
    %619 = vmatpush1.msra.mxu0 0.0
    %620 = vmatprep.subr.mxu0 0.0
    %621 = vmatpush1.msra.mxu0 0.0
    %622 = vmatprep.subr.mxu0 0.0
    %623 = vmatpush1.msra.mxu0 0.0
    %624 = vmatprep.subr.mxu0 0.0
    %625 = vmatpush1.msra.mxu0 0.0
    %626 = vmatprep.subr.mxu0 0.0
    %627 = vmatpush1.msra.mxu0 0.0
    %628 = vmatprep.subr.mxu0 0.0
    %629 = vmatpush1.msra.mxu0 0.0
    %630 = vmatprep.subr.mxu0 0.0
    %631 = vmatpush1.msra.mxu0 0.0
    %632 = vmatprep.subr.mxu0 0.0
    %633 = vmatpush1.msra.mxu0 0.0
    %634 = vmatprep.subr.mxu0 0.0
    %635 = vmatpush1.msra.mxu0 0.0
    %636 = vmatprep.subr.mxu0 0.0
    %637 = vmatpush1.msra.mxu0 0.0
    %638 = vmatprep.subr.mxu0 0.0
    %639 = vmatpush1.msra.mxu0 0.0
    %640 = vmatprep.subr.mxu0 0.0
    %641 = vmatpush1.msra.mxu0 0.0
    %642 = vmatprep.subr.mxu0 0.0
    %643 = vmatpush1.msra.mxu0 0.0
    %644 = vmatprep.subr.mxu0 0.0
    %645 = vmatpush1.msra.mxu0 0.0
    %646 = vmatprep.subr.mxu0 0.0
    %647 = vmatpush1.msra.mxu0 %v579
    %648 = vmatprep.subr.mxu0 0.0
    %649 = vmatpush1.msra.mxu0 %v578
    %650 = vmatprep.subr.mxu0 0.0
    %651 = vmatpush2.msra.mxu0 0.0
    %652 = vmatprep.subr.mxu0 0.0
    %653 = vmatpush2.msra.mxu0 0.0
    %654 = vmatprep.subr.mxu0 0.0
    %655 = vmatpush2.msra.mxu0 0.0
    %656 = vmatprep.subr.mxu0 0.0
    %657 = vmatpush2.msra.mxu0 0.0
    %658 = vmatprep.subr.mxu0 0.0
    %659 = vmatpush2.msra.mxu0 0.0
    %660 = vmatprep.subr.mxu0 0.0
    %661 = vmatpush2.msra.mxu0 0.0
    %662 = vmatprep.subr.mxu0 0.0
    %663 = vmatpush2.msra.mxu0 0.0
    %664 = vmatprep.subr.mxu0 0.0
    %665 = vmatpush2.msra.mxu0 0.0
    %666 = vmatprep.subr.mxu0 0.0
    %667 = vmatpush2.msra.mxu0 0.0
    %668 = vmatprep.subr.mxu0 0.0
    %669 = vmatpush2.msra.mxu0 0.0
    %670 = vmatprep.subr.mxu0 0.0
    %671 = vmatpush2.msra.mxu0 0.0
    %672 = vmatprep.subr.mxu0 0.0
    %673 = vmatpush2.msra.mxu0 0.0
    %674 = vmatprep.subr.mxu0 0.0
    %675 = vmatpush2.msra.mxu0 0.0
    %676 = vmatprep.subr.mxu0 0.0
    %677 = vmatpush2.msra.mxu0 0.0
    %678 = vmatprep.subr.mxu0 0.0
    %679 = vmatpush2.msra.mxu0 0.0
    %680 = vmatprep.subr.mxu0 0.0
    %681 = vmatpush2.msra.mxu0 0.0
    %682 = vmatprep.mubr.f32.mxu0 0.0
    %683 = vmatmul.mubr.f32.gmra.mxu0 %v613
    %v684 = vpop.f32.mrf.mxu0
    %v685 = vadd.f32 %v609, %v684
    %v686 = vpop.f32.mrf.mxu0
    %687 = vmatprep.mubr.f32.mxu0 0.0
    %688 = vmatmul.mubr.f32.gmra.mxu0 %v616
    %v689 = vpop.f32.mrf.mxu0
    %v690 = vadd.f32 %v609, %v689
    %v691 = vpop.f32.mrf.mxu0
    %692 = vdwg.mxu0
    %v693 = vmul.f32 %v583, %v685
    %v694 = vmul.f32 %v584, %v690
    %v696 = vsel %vm494, %v693, 0
    %v699 = vsel %vm494, %v694, 0
    %701 = vmatprep.subr.mxu0 0.0
    %702 = vmatpush1.msra.mxu0 0.0
    %703 = vmatprep.subr.mxu0 0.0
    %704 = vmatpush1.msra.mxu0 0.0
    %705 = vmatprep.subr.mxu0 0.0
    %706 = vmatpush1.msra.mxu0 0.0
    %707 = vmatprep.subr.mxu0 0.0
    %708 = vmatpush1.msra.mxu0 0.0
    %709 = vmatprep.subr.mxu0 0.0
    %710 = vmatpush1.msra.mxu0 0.0
    %711 = vmatprep.subr.mxu0 0.0
    %712 = vmatpush1.msra.mxu0 0.0
    %713 = vmatprep.subr.mxu0 0.0
    %714 = vmatpush1.msra.mxu0 %v604
    %715 = vmatprep.subr.mxu0 0.0
    %716 = vmatpush1.msra.mxu0 %v603
    %717 = vmatprep.subr.mxu0 0.0
    %718 = vmatpush1.msra.mxu0 %v602
    %719 = vmatprep.subr.mxu0 0.0
    %720 = vmatpush1.msra.mxu0 %v601
    %721 = vmatprep.subr.mxu0 0.0
    %722 = vmatpush1.msra.mxu0 %v600
    %723 = vmatprep.subr.mxu0 0.0
    %724 = vmatpush1.msra.mxu0 %v599
    %725 = vmatprep.subr.mxu0 0.0
    %726 = vmatpush1.msra.mxu0 %v598
    %727 = vmatprep.subr.mxu0 0.0
    %728 = vmatpush1.msra.mxu0 %v597
    %729 = vmatprep.subr.mxu0 0.0
    %730 = vmatpush1.msra.mxu0 %v596
    %731 = vmatprep.subr.mxu0 0.0
    %732 = vmatpush1.msra.mxu0 %v595
    %733 = vmatprep.subr.mxu0 0.0
    %734 = vmatpush2.msra.mxu0 0.0
    %735 = vmatprep.subr.mxu0 0.0
    %736 = vmatpush2.msra.mxu0 0.0
    %737 = vmatprep.subr.mxu0 0.0
    %738 = vmatpush2.msra.mxu0 0.0
    %739 = vmatprep.subr.mxu0 0.0
    %740 = vmatpush2.msra.mxu0 0.0
    %741 = vmatprep.subr.mxu0 0.0
    %742 = vmatpush2.msra.mxu0 0.0
    %743 = vmatprep.subr.mxu0 0.0
    %744 = vmatpush2.msra.mxu0 0.0
    %745 = vmatprep.subr.mxu0 0.0
    %746 = vmatpush2.msra.mxu0 0.0
    %747 = vmatprep.subr.mxu0 0.0
    %748 = vmatpush2.msra.mxu0 0.0
    %749 = vmatprep.subr.mxu0 0.0
    %750 = vmatpush2.msra.mxu0 0.0
    %751 = vmatprep.subr.mxu0 0.0
    %752 = vmatpush2.msra.mxu0 0.0
    %753 = vmatprep.subr.mxu0 0.0
    %754 = vmatpush2.msra.mxu0 0.0
    %755 = vmatprep.subr.mxu0 0.0
    %756 = vmatpush2.msra.mxu0 0.0
    %757 = vmatprep.subr.mxu0 0.0
    %758 = vmatpush2.msra.mxu0 0.0
    %759 = vmatprep.subr.mxu0 0.0
    %760 = vmatpush2.msra.mxu0 0.0
    %761 = vmatprep.subr.mxu0 0.0
    %762 = vmatpush2.msra.mxu0 0.0
    %763 = vmatprep.subr.mxu0 0.0
    %764 = vmatpush2.msra.mxu0 0.0
    %765 = vmatprep.mubr.f32.mxu0 0.0
    %766 = vmatmul.mubr.f32.gmra.mxu0 %v696
    %v767 = vpop.f32.mrf.mxu0
    %v768 = vadd.f32 0.0, %v767
    %v769 = vpop.f32.mrf.mxu0
    %770 = vmatprep.mubr.f32.mxu0 0.0
    %771 = vmatmul.mubr.f32.gmra.mxu0 %v699
    %v772 = vpop.f32.mrf.mxu0
    %v773 = vadd.f32 0.0, %v772
    %v774 = vpop.f32.mrf.mxu0
    %775 = vdwg.mxu0
    %776 = vxpose.xlu0.b32.start [1/16] %v130, 128
    %777 = vxpose.xlu0.b32.cont [2/16] %v131, 128
    %778 = vxpose.xlu0.b32.cont [3/16] 0.0, 128
    %779 = vxpose.xlu0.b32.cont [4/16] 0.0, 128
    %780 = vxpose.xlu0.b32.cont [5/16] 0.0, 128
    %781 = vxpose.xlu0.b32.cont [6/16] 0.0, 128
    %782 = vxpose.xlu0.b32.cont [7/16] 0.0, 128
    %783 = vxpose.xlu0.b32.cont [8/16] 0.0, 128
    %784 = vxpose.xlu0.b32.cont [9/16] 0.0, 128
    %785 = vxpose.xlu0.b32.cont [10/16] 0.0, 128
    %786 = vxpose.xlu0.b32.cont [11/16] 0.0, 128
    %787 = vxpose.xlu0.b32.cont [12/16] 0.0, 128
    %788 = vxpose.xlu0.b32.cont [13/16] 0.0, 128
    %789 = vxpose.xlu0.b32.cont [14/16] 0.0, 128
    %790 = vxpose.xlu0.b32.cont [15/16] 0.0, 128
    %791 = vxpose.xlu0.b32.end [16/16] 0.0, 128
    %v792 = vpop.trf.xlu0
    %v793 = vpop.trf.xlu0
    %v794 = vpop.trf.xlu0
    %v795 = vpop.trf.xlu0
    %v796 = vpop.trf.xlu0
    %v797 = vpop.trf.xlu0
    %v798 = vpop.trf.xlu0
    %v799 = vpop.trf.xlu0
    %v800 = vpop.trf.xlu0
    %v801 = vpop.trf.xlu0
    %v802 = vpop.trf.xlu0
    %v803 = vpop.trf.xlu0
    %v804 = vpop.trf.xlu0
    %v805 = vpop.trf.xlu0
    %v806 = vpop.trf.xlu0
    %v807 = vpop.trf.xlu0
    %vm808 = vcmask 80896
    %v810 = vsel %vm808, %v792, 0
    %vm812 = vcmask 1041408
    %v814 = vsel %vm812, %v773, 0
    %816 = vmatprep.subr.mxu0 0.0
    %817 = vmatpush1.msra.mxu0 0.0
    %818 = vmatprep.subr.mxu0 0.0
    %819 = vmatpush1.msra.mxu0 0.0
    %820 = vmatprep.subr.mxu0 0.0
    %821 = vmatpush1.msra.mxu0 0.0
    %822 = vmatprep.subr.mxu0 0.0
    %823 = vmatpush1.msra.mxu0 0.0
    %824 = vmatprep.subr.mxu0 0.0
    %825 = vmatpush1.msra.mxu0 0.0
    %826 = vmatprep.subr.mxu0 0.0
    %827 = vmatpush1.msra.mxu0 0.0
    %828 = vmatprep.subr.mxu0 0.0
    %829 = vmatpush1.msra.mxu0 0.0
    %830 = vmatprep.subr.mxu0 0.0
    %831 = vmatpush1.msra.mxu0 0.0
    %832 = vmatprep.subr.mxu0 0.0
    %833 = vmatpush1.msra.mxu0 0.0
    %834 = vmatprep.subr.mxu0 0.0
    %835 = vmatpush1.msra.mxu0 0.0
    %836 = vmatprep.subr.mxu0 0.0
    %837 = vmatpush1.msra.mxu0 0.0
    %838 = vmatprep.subr.mxu0 0.0
    %839 = vmatpush1.msra.mxu0 0.0
    %840 = vmatprep.subr.mxu0 0.0
    %841 = vmatpush1.msra.mxu0 0.0
    %842 = vmatprep.subr.mxu0 0.0
    %843 = vmatpush1.msra.mxu0 0.0
    %844 = vmatprep.subr.mxu0 0.0
    %845 = vmatpush1.msra.mxu0 %v814
    %846 = vmatprep.subr.mxu0 0.0
    %847 = vmatpush1.msra.mxu0 %v768
    %848 = vmatprep.subr.mxu0 0.0
    %849 = vmatpush2.msra.mxu0 0.0
    %850 = vmatprep.subr.mxu0 0.0
    %851 = vmatpush2.msra.mxu0 0.0
    %852 = vmatprep.subr.mxu0 0.0
    %853 = vmatpush2.msra.mxu0 0.0
    %854 = vmatprep.subr.mxu0 0.0
    %855 = vmatpush2.msra.mxu0 0.0
    %856 = vmatprep.subr.mxu0 0.0
    %857 = vmatpush2.msra.mxu0 0.0
    %858 = vmatprep.subr.mxu0 0.0
    %859 = vmatpush2.msra.mxu0 0.0
    %860 = vmatprep.subr.mxu0 0.0
    %861 = vmatpush2.msra.mxu0 0.0
    %862 = vmatprep.subr.mxu0 0.0
    %863 = vmatpush2.msra.mxu0 0.0
    %864 = vmatprep.subr.mxu0 0.0
    %865 = vmatpush2.msra.mxu0 0.0
    %866 = vmatprep.subr.mxu0 0.0
    %867 = vmatpush2.msra.mxu0 0.0
    %868 = vmatprep.subr.mxu0 0.0
    %869 = vmatpush2.msra.mxu0 0.0
    %870 = vmatprep.subr.mxu0 0.0
    %871 = vmatpush2.msra.mxu0 0.0
    %872 = vmatprep.subr.mxu0 0.0
    %873 = vmatpush2.msra.mxu0 0.0
    %874 = vmatprep.subr.mxu0 0.0
    %875 = vmatpush2.msra.mxu0 0.0
    %876 = vmatprep.subr.mxu0 0.0
    %877 = vmatpush2.msra.mxu0 0.0
    %878 = vmatprep.subr.mxu0 0.0
    %879 = vmatpush2.msra.mxu0 0.0
    %880 = vmatprep.mubr.f32.mxu0 0.0
    %881 = vmatmul.mubr.f32.gmra.mxu0 %v810
    %v882 = vpop.f32.mrf.mxu0
    %v883 = vadd.f32 0.0, %v882
    %v884 = vpop.f32.mrf.mxu0
    %885 = vdwg.mxu0
    %v886 = vmax.f32 %v883, 0.0
    %v887 = vld [vmem:[%s25] sm:$0xff]
    %v888 = vld [vmem:[%s27] sm:$0x1]
    %v889 = vld [vmem:[%s29] sm:$0xf]
    %v890 = vunpack.c.l.bf16 %v889
    %v891 = vld [vmem:[%s31] sm:$0xf]
    %v892 = vld [vmem:[%s31 + $0x4] sm:$0xf]
    %v893 = vld [vmem:[%s31 + $0x8] sm:$0xf]
    %v894 = vld [vmem:[%s31 + $0xc] sm:$0xf]
    %v895 = vld [vmem:[%s31 + $0x10] sm:$0xf]
    %v896 = vld [vmem:[%s31 + $0x14] sm:$0xf]
    %v897 = vld [vmem:[%s31 + $0x18] sm:$0xf]
    %v898 = vld [vmem:[%s31 + $0x1c] sm:$0xf]
    %v899 = vunpack.c.l.bf16 %v891
    %v900 = vunpack.c.l.bf16 %v892
    %v901 = vunpack.c.l.bf16 %v893
    %v902 = vunpack.c.l.bf16 %v894
    %v903 = vunpack.c.l.bf16 %v895
    %v904 = vunpack.c.l.bf16 %v896
    %v905 = vunpack.c.l.bf16 %v897
    %v906 = vunpack.c.l.bf16 %v898
    %v908 = vlaneseq
    %v909 = vshrl.u32 %v908, 7
    %v910 = vsub.s32 0, %v909
    %v911 = vrot.slane %v888, %v910
    %v914 = vsel %vm132, %v123, 0
    %916 = vmatprep.subr.mxu0 0.0
    %917 = vmatpush1.msra.mxu0 0.0
    %918 = vmatprep.subr.mxu0 0.0
    %919 = vmatpush1.msra.mxu0 0.0
    %920 = vmatprep.subr.mxu0 0.0
    %921 = vmatpush1.msra.mxu0 0.0
    %922 = vmatprep.subr.mxu0 0.0
    %923 = vmatpush1.msra.mxu0 0.0
    %924 = vmatprep.subr.mxu0 0.0
    %925 = vmatpush1.msra.mxu0 0.0
    %926 = vmatprep.subr.mxu0 0.0
    %927 = vmatpush1.msra.mxu0 0.0
    %928 = vmatprep.subr.mxu0 0.0
    %929 = vmatpush1.msra.mxu0 0.0
    %930 = vmatprep.subr.mxu0 0.0
    %931 = vmatpush1.msra.mxu0 0.0
    %932 = vmatprep.subr.mxu0 0.0
    %933 = vmatpush1.msra.mxu0 0.0
    %934 = vmatprep.subr.mxu0 0.0
    %935 = vmatpush1.msra.mxu0 0.0
    %936 = vmatprep.subr.mxu0 0.0
    %937 = vmatpush1.msra.mxu0 0.0
    %938 = vmatprep.subr.mxu0 0.0
    %939 = vmatpush1.msra.mxu0 0.0
    %940 = vmatprep.subr.mxu0 0.0
    %941 = vmatpush1.msra.mxu0 0.0
    %942 = vmatprep.subr.mxu0 0.0
    %943 = vmatpush1.msra.mxu0 0.0
    %944 = vmatprep.subr.mxu0 0.0
    %945 = vmatpush1.msra.mxu0 0.0
    %946 = vmatprep.subr.mxu0 0.0
    %947 = vmatpush1.msra.mxu0 %v887
    %948 = vmatprep.subr.mxu0 0.0
    %949 = vmatpush2.msra.mxu0 0.0
    %950 = vmatprep.subr.mxu0 0.0
    %951 = vmatpush2.msra.mxu0 0.0
    %952 = vmatprep.subr.mxu0 0.0
    %953 = vmatpush2.msra.mxu0 0.0
    %954 = vmatprep.subr.mxu0 0.0
    %955 = vmatpush2.msra.mxu0 0.0
    %956 = vmatprep.subr.mxu0 0.0
    %957 = vmatpush2.msra.mxu0 0.0
    %958 = vmatprep.subr.mxu0 0.0
    %959 = vmatpush2.msra.mxu0 0.0
    %960 = vmatprep.subr.mxu0 0.0
    %961 = vmatpush2.msra.mxu0 0.0
    %962 = vmatprep.subr.mxu0 0.0
    %963 = vmatpush2.msra.mxu0 0.0
    %964 = vmatprep.subr.mxu0 0.0
    %965 = vmatpush2.msra.mxu0 0.0
    %966 = vmatprep.subr.mxu0 0.0
    %967 = vmatpush2.msra.mxu0 0.0
    %968 = vmatprep.subr.mxu0 0.0
    %969 = vmatpush2.msra.mxu0 0.0
    %970 = vmatprep.subr.mxu0 0.0
    %971 = vmatpush2.msra.mxu0 0.0
    %972 = vmatprep.subr.mxu0 0.0
    %973 = vmatpush2.msra.mxu0 0.0
    %974 = vmatprep.subr.mxu0 0.0
    %975 = vmatpush2.msra.mxu0 0.0
    %976 = vmatprep.subr.mxu0 0.0
    %977 = vmatpush2.msra.mxu0 0.0
    %978 = vmatprep.subr.mxu0 0.0
    %979 = vmatpush2.msra.mxu0 0.0
    %980 = vmatprep.mubr.f32.mxu0 0.0
    %981 = vmatmul.mubr.f32.gmra.mxu0 %v914
    %v982 = vpop.f32.mrf.mxu0
    %v983 = vadd.f32 %v911, %v982
    %v984 = vpop.f32.mrf.mxu0
    %985 = vdwg.mxu0
    %v986 = vmul.f32 %v890, %v983
    %vm987 = vcmask 523264
    %v989 = vsel %vm987, %v986, 0
    %991 = vmatprep.subr.mxu0 0.0
    %992 = vmatpush1.msra.mxu0 0.0
    %993 = vmatprep.subr.mxu0 0.0
    %994 = vmatpush1.msra.mxu0 0.0
    %995 = vmatprep.subr.mxu0 0.0
    %996 = vmatpush1.msra.mxu0 0.0
    %997 = vmatprep.subr.mxu0 0.0
    %998 = vmatpush1.msra.mxu0 0.0
    %999 = vmatprep.subr.mxu0 0.0
    %1000 = vmatpush1.msra.mxu0 0.0
    %1001 = vmatprep.subr.mxu0 0.0
    %1002 = vmatpush1.msra.mxu0 0.0
    %1003 = vmatprep.subr.mxu0 0.0
    %1004 = vmatpush1.msra.mxu0 0.0
    %1005 = vmatprep.subr.mxu0 0.0
    %1006 = vmatpush1.msra.mxu0 0.0
    %1007 = vmatprep.subr.mxu0 0.0
    %1008 = vmatpush1.msra.mxu0 %v906
    %1009 = vmatprep.subr.mxu0 0.0
    %1010 = vmatpush1.msra.mxu0 %v905
    %1011 = vmatprep.subr.mxu0 0.0
    %1012 = vmatpush1.msra.mxu0 %v904
    %1013 = vmatprep.subr.mxu0 0.0
    %1014 = vmatpush1.msra.mxu0 %v903
    %1015 = vmatprep.subr.mxu0 0.0
    %1016 = vmatpush1.msra.mxu0 %v902
    %1017 = vmatprep.subr.mxu0 0.0
    %1018 = vmatpush1.msra.mxu0 %v901
    %1019 = vmatprep.subr.mxu0 0.0
    %1020 = vmatpush1.msra.mxu0 %v900
    %1021 = vmatprep.subr.mxu0 0.0
    %1022 = vmatpush1.msra.mxu0 %v899
    %1023 = vmatprep.subr.mxu0 0.0
    %1024 = vmatpush2.msra.mxu0 0.0
    %1025 = vmatprep.subr.mxu0 0.0
    %1026 = vmatpush2.msra.mxu0 0.0
    %1027 = vmatprep.subr.mxu0 0.0
    %1028 = vmatpush2.msra.mxu0 0.0
    %1029 = vmatprep.subr.mxu0 0.0
    %1030 = vmatpush2.msra.mxu0 0.0
    %1031 = vmatprep.subr.mxu0 0.0
    %1032 = vmatpush2.msra.mxu0 0.0
    %1033 = vmatprep.subr.mxu0 0.0
    %1034 = vmatpush2.msra.mxu0 0.0
    %1035 = vmatprep.subr.mxu0 0.0
    %1036 = vmatpush2.msra.mxu0 0.0
    %1037 = vmatprep.subr.mxu0 0.0
    %1038 = vmatpush2.msra.mxu0 0.0
    %1039 = vmatprep.subr.mxu0 0.0
    %1040 = vmatpush2.msra.mxu0 0.0
    %1041 = vmatprep.subr.mxu0 0.0
    %1042 = vmatpush2.msra.mxu0 0.0
    %1043 = vmatprep.subr.mxu0 0.0
    %1044 = vmatpush2.msra.mxu0 0.0
    %1045 = vmatprep.subr.mxu0 0.0
    %1046 = vmatpush2.msra.mxu0 0.0
    %1047 = vmatprep.subr.mxu0 0.0
    %1048 = vmatpush2.msra.mxu0 0.0
    %1049 = vmatprep.subr.mxu0 0.0
    %1050 = vmatpush2.msra.mxu0 0.0
    %1051 = vmatprep.subr.mxu0 0.0
    %1052 = vmatpush2.msra.mxu0 0.0
    %1053 = vmatprep.subr.mxu0 0.0
    %1054 = vmatpush2.msra.mxu0 0.0
    %1055 = vmatprep.mubr.f32.mxu0 0.0
    %1056 = vmatmul.mubr.f32.gmra.mxu0 %v989
    %v1057 = vpop.f32.mrf.mxu0
    %v1058 = vadd.f32 0.0, %v1057
    %v1059 = vpop.f32.mrf.mxu0
    %1060 = vdwg.mxu0
    %v1061 = vadd.f32 %v886, %v1058
    %1062 = vmatprep.subr.mxu0 0.0
    %1063 = vmatpush1.msra.mxu0 0.0
    %1064 = vmatprep.subr.mxu0 0.0
    %1065 = vmatpush1.msra.mxu0 0.0
    %1066 = vmatprep.subr.mxu0 0.0
    %1067 = vmatpush1.msra.mxu0 0.0
    %1068 = vmatprep.subr.mxu0 0.0
    %1069 = vmatpush1.msra.mxu0 0.0
    %1070 = vmatprep.subr.mxu0 0.0
    %1071 = vmatpush1.msra.mxu0 0.0
    %1072 = vmatprep.subr.mxu0 0.0
    %1073 = vmatpush1.msra.mxu0 0.0
    %1074 = vmatprep.subr.mxu0 0.0
    %1075 = vmatpush1.msra.mxu0 0.0
    %1076 = vmatprep.subr.mxu0 0.0
    %1077 = vmatpush1.msra.mxu0 0.0
    %1078 = vmatprep.subr.mxu0 0.0
    %1079 = vmatpush1.msra.mxu0 0.0
    %1080 = vmatprep.subr.mxu0 0.0
    %1081 = vmatpush1.msra.mxu0 0.0
    %1082 = vmatprep.subr.mxu0 0.0
    %1083 = vmatpush1.msra.mxu0 0.0
    %1084 = vmatprep.subr.mxu0 0.0
    %1085 = vmatpush1.msra.mxu0 0.0
    %1086 = vmatprep.subr.mxu0 0.0
    %1087 = vmatpush1.msra.mxu0 0.0
    %1088 = vmatprep.subr.mxu0 0.0
    %1089 = vmatpush1.msra.mxu0 0.0
    %1090 = vmatprep.subr.mxu0 0.0
    %1091 = vmatpush1.msra.mxu0 0.0
    %1092 = vmatprep.subr.mxu0 0.0
    %1093 = vmatpush1.msra.mxu0 %v1061
    %1094 = vmatprep.subr.mxu0 0.0
    %1095 = vmatpush2.msra.mxu0 0.0
    %1096 = vmatprep.subr.mxu0 0.0
    %1097 = vmatpush2.msra.mxu0 0.0
    %1098 = vmatprep.subr.mxu0 0.0
    %1099 = vmatpush2.msra.mxu0 0.0
    %1100 = vmatprep.subr.mxu0 0.0
    %1101 = vmatpush2.msra.mxu0 0.0
    %1102 = vmatprep.subr.mxu0 0.0
    %1103 = vmatpush2.msra.mxu0 0.0
    %1104 = vmatprep.subr.mxu0 0.0
    %1105 = vmatpush2.msra.mxu0 0.0
    %1106 = vmatprep.subr.mxu0 0.0
    %1107 = vmatpush2.msra.mxu0 0.0
    %1108 = vmatprep.subr.mxu0 0.0
    %1109 = vmatpush2.msra.mxu0 0.0
    %1110 = vmatprep.subr.mxu0 0.0
    %1111 = vmatpush2.msra.mxu0 0.0
    %1112 = vmatprep.subr.mxu0 0.0
    %1113 = vmatpush2.msra.mxu0 0.0
    %1114 = vmatprep.subr.mxu0 0.0
    %1115 = vmatpush2.msra.mxu0 0.0
    %1116 = vmatprep.subr.mxu0 0.0
    %1117 = vmatpush2.msra.mxu0 0.0
    %1118 = vmatprep.subr.mxu0 0.0
    %1119 = vmatpush2.msra.mxu0 0.0
    %1120 = vmatprep.subr.mxu0 0.0
    %1121 = vmatpush2.msra.mxu0 0.0
    %1122 = vmatprep.subr.mxu0 0.0
    %1123 = vmatpush2.msra.mxu0 0.0
    %1124 = vmatprep.subr.mxu0 0.0
    %1125 = vmatpush2.msra.mxu0 0.0
    %1126 = vmatprep.mubr.f32.mxu0 0.0
    %1127 = vmatmul.mubr.f32.gmra.mxu0 %v134
    %v1128 = vpop.f32.mrf.mxu0
    %v1129 = vadd.f32 0.0, %v1128
    %v1130 = vpop.f32.mrf.mxu0
    %1131 = vmatprep.mubr.f32.mxu0 0.0
    %1132 = vmatmul.mubr.f32.gmra.mxu0 %v137
    %v1133 = vpop.f32.mrf.mxu0
    %v1134 = vadd.f32 0.0, %v1133
    %v1135 = vpop.f32.mrf.mxu0
    %1136 = vdwg.mxu0
    %1137 = vmatprep.subr.mxu0 0.0
    %1138 = vmatpush1.msra.mxu0 0.0
    %1139 = vmatprep.subr.mxu0 0.0
    %1140 = vmatpush1.msra.mxu0 0.0
    %1141 = vmatprep.subr.mxu0 0.0
    %1142 = vmatpush1.msra.mxu0 0.0
    %1143 = vmatprep.subr.mxu0 0.0
    %1144 = vmatpush1.msra.mxu0 0.0
    %1145 = vmatprep.subr.mxu0 0.0
    %1146 = vmatpush1.msra.mxu0 0.0
    %1147 = vmatprep.subr.mxu0 0.0
    %1148 = vmatpush1.msra.mxu0 0.0
    %1149 = vmatprep.subr.mxu0 0.0
    %1150 = vmatpush1.msra.mxu0 0.0
    %1151 = vmatprep.subr.mxu0 0.0
    %1152 = vmatpush1.msra.mxu0 0.0
    %1153 = vmatprep.subr.mxu0 0.0
    %1154 = vmatpush1.msra.mxu0 0.0
    %1155 = vmatprep.subr.mxu0 0.0
    %1156 = vmatpush1.msra.mxu0 0.0
    %1157 = vmatprep.subr.mxu0 0.0
    %1158 = vmatpush1.msra.mxu0 0.0
    %1159 = vmatprep.subr.mxu0 0.0
    %1160 = vmatpush1.msra.mxu0 0.0
    %1161 = vmatprep.subr.mxu0 0.0
    %1162 = vmatpush1.msra.mxu0 0.0
    %1163 = vmatprep.subr.mxu0 0.0
    %1164 = vmatpush1.msra.mxu0 0.0
    %1165 = vmatprep.subr.mxu0 0.0
    %1166 = vmatpush1.msra.mxu0 0.0
    %1167 = vmatprep.subr.mxu0 0.0
    %1168 = vmatpush1.msra.mxu0 %v1061
    %1169 = vmatprep.subr.mxu0 0.0
    %1170 = vmatpush2.msra.mxu0 0.0
    %1171 = vmatprep.subr.mxu0 0.0
    %1172 = vmatpush2.msra.mxu0 0.0
    %1173 = vmatprep.subr.mxu0 0.0
    %1174 = vmatpush2.msra.mxu0 0.0
    %1175 = vmatprep.subr.mxu0 0.0
    %1176 = vmatpush2.msra.mxu0 0.0
    %1177 = vmatprep.subr.mxu0 0.0
    %1178 = vmatpush2.msra.mxu0 0.0
    %1179 = vmatprep.subr.mxu0 0.0
    %1180 = vmatpush2.msra.mxu0 0.0
    %1181 = vmatprep.subr.mxu0 0.0
    %1182 = vmatpush2.msra.mxu0 0.0
    %1183 = vmatprep.subr.mxu0 0.0
    %1184 = vmatpush2.msra.mxu0 0.0
    %1185 = vmatprep.subr.mxu0 0.0
    %1186 = vmatpush2.msra.mxu0 0.0
    %1187 = vmatprep.subr.mxu0 0.0
    %1188 = vmatpush2.msra.mxu0 0.0
    %1189 = vmatprep.subr.mxu0 0.0
    %1190 = vmatpush2.msra.mxu0 0.0
    %1191 = vmatprep.subr.mxu0 0.0
    %1192 = vmatpush2.msra.mxu0 0.0
    %1193 = vmatprep.subr.mxu0 0.0
    %1194 = vmatpush2.msra.mxu0 0.0
    %1195 = vmatprep.subr.mxu0 0.0
    %1196 = vmatpush2.msra.mxu0 0.0
    %1197 = vmatprep.subr.mxu0 0.0
    %1198 = vmatpush2.msra.mxu0 0.0
    %1199 = vmatprep.subr.mxu0 0.0
    %1200 = vmatpush2.msra.mxu0 0.0
    %1201 = vmatprep.mubr.f32.mxu0 0.0
    %1202 = vmatmul.mubr.f32.gmra.mxu0 %v215
    %v1203 = vpop.f32.mrf.mxu0
    %v1204 = vadd.f32 0.0, %v1203
    %v1205 = vpop.f32.mrf.mxu0
    %1206 = vmatprep.mubr.f32.mxu0 0.0
    %1207 = vmatmul.mubr.f32.gmra.mxu0 %v218
    %v1208 = vpop.f32.mrf.mxu0
    %v1209 = vadd.f32 0.0, %v1208
    %v1210 = vpop.f32.mrf.mxu0
    %1211 = vdwg.mxu0
    %v1212 = vld [vmem:[%s33] sm:$0xff]
    %v1213 = vld [vmem:[%s33 + $0x8] sm:$0xff]
    %v1214 = vld [vmem:[%s35] sm:$0xff]
    %v1215 = vld [vmem:[%s35 + $0x8] sm:$0xff]
    %v1217 = vsel %vm611, %v1129, 0
    %v1220 = vsel %vm611, %v1134, 0
    %1222 = vmatprep.subr.mxu0 0.0
    %1223 = vmatpush1.msra.mxu0 0.0
    %1224 = vmatprep.subr.mxu0 0.0
    %1225 = vmatpush1.msra.mxu0 0.0
    %1226 = vmatprep.subr.mxu0 0.0
    %1227 = vmatpush1.msra.mxu0 0.0
    %1228 = vmatprep.subr.mxu0 0.0
    %1229 = vmatpush1.msra.mxu0 0.0
    %1230 = vmatprep.subr.mxu0 0.0
    %1231 = vmatpush1.msra.mxu0 0.0
    %1232 = vmatprep.subr.mxu0 0.0
    %1233 = vmatpush1.msra.mxu0 0.0
    %1234 = vmatprep.subr.mxu0 0.0
    %1235 = vmatpush1.msra.mxu0 0.0
    %1236 = vmatprep.subr.mxu0 0.0
    %1237 = vmatpush1.msra.mxu0 0.0
    %1238 = vmatprep.subr.mxu0 0.0
    %1239 = vmatpush1.msra.mxu0 0.0
    %1240 = vmatprep.subr.mxu0 0.0
    %1241 = vmatpush1.msra.mxu0 0.0
    %1242 = vmatprep.subr.mxu0 0.0
    %1243 = vmatpush1.msra.mxu0 0.0
    %1244 = vmatprep.subr.mxu0 0.0
    %1245 = vmatpush1.msra.mxu0 0.0
    %1246 = vmatprep.subr.mxu0 0.0
    %1247 = vmatpush1.msra.mxu0 0.0
    %1248 = vmatprep.subr.mxu0 0.0
    %1249 = vmatpush1.msra.mxu0 0.0
    %1250 = vmatprep.subr.mxu0 0.0
    %1251 = vmatpush1.msra.mxu0 %v1215
    %1252 = vmatprep.subr.mxu0 0.0
    %1253 = vmatpush1.msra.mxu0 %v1214
    %1254 = vmatprep.subr.mxu0 0.0
    %1255 = vmatpush2.msra.mxu0 0.0
    %1256 = vmatprep.subr.mxu0 0.0
    %1257 = vmatpush2.msra.mxu0 0.0
    %1258 = vmatprep.subr.mxu0 0.0
    %1259 = vmatpush2.msra.mxu0 0.0
    %1260 = vmatprep.subr.mxu0 0.0
    %1261 = vmatpush2.msra.mxu0 0.0
    %1262 = vmatprep.subr.mxu0 0.0
    %1263 = vmatpush2.msra.mxu0 0.0
    %1264 = vmatprep.subr.mxu0 0.0
    %1265 = vmatpush2.msra.mxu0 0.0
    %1266 = vmatprep.subr.mxu0 0.0
    %1267 = vmatpush2.msra.mxu0 0.0
    %1268 = vmatprep.subr.mxu0 0.0
    %1269 = vmatpush2.msra.mxu0 0.0
    %1270 = vmatprep.subr.mxu0 0.0
    %1271 = vmatpush2.msra.mxu0 0.0
    %1272 = vmatprep.subr.mxu0 0.0
    %1273 = vmatpush2.msra.mxu0 0.0
    %1274 = vmatprep.subr.mxu0 0.0
    %1275 = vmatpush2.msra.mxu0 0.0
    %1276 = vmatprep.subr.mxu0 0.0
    %1277 = vmatpush2.msra.mxu0 0.0
    %1278 = vmatprep.subr.mxu0 0.0
    %1279 = vmatpush2.msra.mxu0 0.0
    %1280 = vmatprep.subr.mxu0 0.0
    %1281 = vmatpush2.msra.mxu0 0.0
    %1282 = vmatprep.subr.mxu0 0.0
    %1283 = vmatpush2.msra.mxu0 0.0
    %1284 = vmatprep.subr.mxu0 0.0
    %1285 = vmatpush2.msra.mxu0 0.0
    %1286 = vmatprep.mubr.f32.mxu0 0.0
    %1287 = vmatmul.mubr.f32.gmra.mxu0 %v1217
    %v1288 = vpop.f32.mrf.mxu0
    %v1289 = vadd.f32 0.0, %v1288
    %v1290 = vpop.f32.mrf.mxu0
    %1291 = vmatprep.mubr.f32.mxu0 0.0
    %1292 = vmatmul.mubr.f32.gmra.mxu0 %v1220
    %v1293 = vpop.f32.mrf.mxu0
    %v1294 = vadd.f32 0.0, %v1293
    %v1295 = vpop.f32.mrf.mxu0
    %1296 = vdwg.mxu0
    %v1298 = vsel %vm611, %v1204, 0
    %v1301 = vsel %vm611, %v1209, 0
    %1303 = vmatprep.subr.mxu0 0.0
    %1304 = vmatpush1.msra.mxu0 0.0
    %1305 = vmatprep.subr.mxu0 0.0
    %1306 = vmatpush1.msra.mxu0 0.0
    %1307 = vmatprep.subr.mxu0 0.0
    %1308 = vmatpush1.msra.mxu0 0.0
    %1309 = vmatprep.subr.mxu0 0.0
    %1310 = vmatpush1.msra.mxu0 0.0
    %1311 = vmatprep.subr.mxu0 0.0
    %1312 = vmatpush1.msra.mxu0 0.0
    %1313 = vmatprep.subr.mxu0 0.0
    %1314 = vmatpush1.msra.mxu0 0.0
    %1315 = vmatprep.subr.mxu0 0.0
    %1316 = vmatpush1.msra.mxu0 0.0
    %1317 = vmatprep.subr.mxu0 0.0
    %1318 = vmatpush1.msra.mxu0 0.0
    %1319 = vmatprep.subr.mxu0 0.0
    %1320 = vmatpush1.msra.mxu0 0.0
    %1321 = vmatprep.subr.mxu0 0.0
    %1322 = vmatpush1.msra.mxu0 0.0
    %1323 = vmatprep.subr.mxu0 0.0
    %1324 = vmatpush1.msra.mxu0 0.0
    %1325 = vmatprep.subr.mxu0 0.0
    %1326 = vmatpush1.msra.mxu0 0.0
    %1327 = vmatprep.subr.mxu0 0.0
    %1328 = vmatpush1.msra.mxu0 0.0
    %1329 = vmatprep.subr.mxu0 0.0
    %1330 = vmatpush1.msra.mxu0 0.0
    %1331 = vmatprep.subr.mxu0 0.0
    %1332 = vmatpush1.msra.mxu0 %v1213
    %1333 = vmatprep.subr.mxu0 0.0
    %1334 = vmatpush1.msra.mxu0 %v1212
    %1335 = vmatprep.subr.mxu0 0.0
    %1336 = vmatpush2.msra.mxu0 0.0
    %1337 = vmatprep.subr.mxu0 0.0
    %1338 = vmatpush2.msra.mxu0 0.0
    %1339 = vmatprep.subr.mxu0 0.0
    %1340 = vmatpush2.msra.mxu0 0.0
    %1341 = vmatprep.subr.mxu0 0.0
    %1342 = vmatpush2.msra.mxu0 0.0
    %1343 = vmatprep.subr.mxu0 0.0
    %1344 = vmatpush2.msra.mxu0 0.0
    %1345 = vmatprep.subr.mxu0 0.0
    %1346 = vmatpush2.msra.mxu0 0.0
    %1347 = vmatprep.subr.mxu0 0.0
    %1348 = vmatpush2.msra.mxu0 0.0
    %1349 = vmatprep.subr.mxu0 0.0
    %1350 = vmatpush2.msra.mxu0 0.0
    %1351 = vmatprep.subr.mxu0 0.0
    %1352 = vmatpush2.msra.mxu0 0.0
    %1353 = vmatprep.subr.mxu0 0.0
    %1354 = vmatpush2.msra.mxu0 0.0
    %1355 = vmatprep.subr.mxu0 0.0
    %1356 = vmatpush2.msra.mxu0 0.0
    %1357 = vmatprep.subr.mxu0 0.0
    %1358 = vmatpush2.msra.mxu0 0.0
    %1359 = vmatprep.subr.mxu0 0.0
    %1360 = vmatpush2.msra.mxu0 0.0
    %1361 = vmatprep.subr.mxu0 0.0
    %1362 = vmatpush2.msra.mxu0 0.0
    %1363 = vmatprep.subr.mxu0 0.0
    %1364 = vmatpush2.msra.mxu0 0.0
    %1365 = vmatprep.subr.mxu0 0.0
    %1366 = vmatpush2.msra.mxu0 0.0
    %1367 = vmatprep.mubr.f32.mxu0 0.0
    %1368 = vmatmul.mubr.f32.gmra.mxu0 %v1298
    %v1369 = vpop.f32.mrf.mxu0
    %v1370 = vadd.f32 %v1289, %v1369
    %v1371 = vpop.f32.mrf.mxu0
    %1372 = vmatprep.mubr.f32.mxu0 0.0
    %1373 = vmatmul.mubr.f32.gmra.mxu0 %v1301
    %v1374 = vpop.f32.mrf.mxu0
    %v1375 = vadd.f32 %v1294, %v1374
    %v1376 = vpop.f32.mrf.mxu0
    %1377 = vdwg.mxu0
    %v1378 = vld [vmem:[%s37] sm:$0x1]
    %v1379 = vld [vmem:[%s39] sm:$0xf]
    %v1380 = vld [vmem:[%s39 + $0x4] sm:$0x1]
    %v1381 = vunpack.c.l.bf16 %v1379
    %v1382 = vunpack.c.l.bf16 %v1380
    %v1383 = vld [vmem:[%s41] sm:$0xf]
    %v1384 = vld [vmem:[%s41 + $0x4] sm:$0xf]
    %v1385 = vld [vmem:[%s41 + $0x8] sm:$0xf]
    %v1386 = vld [vmem:[%s41 + $0xc] sm:$0xf]
    %v1387 = vld [vmem:[%s41 + $0x10] sm:$0xf]
    %v1388 = vld [vmem:[%s41 + $0x14] sm:$0xf]
    %v1389 = vld [vmem:[%s41 + $0x18] sm:$0xf]
    %v1390 = vld [vmem:[%s41 + $0x1c] sm:$0xf]
    %v1391 = vld [vmem:[%s41 + $0x20] sm:$0xf]
    %v1392 = vld [vmem:[%s41 + $0x24] sm:$0xf]
    %v1393 = vunpack.c.l.bf16 %v1383
    %v1394 = vunpack.c.l.bf16 %v1384
    %v1395 = vunpack.c.l.bf16 %v1385
    %v1396 = vunpack.c.l.bf16 %v1386
    %v1397 = vunpack.c.l.bf16 %v1387
    %v1398 = vunpack.c.l.bf16 %v1388
    %v1399 = vunpack.c.l.bf16 %v1389
    %v1400 = vunpack.c.l.bf16 %v1390
    %v1401 = vunpack.c.l.bf16 %v1391
    %v1402 = vunpack.c.l.bf16 %v1392
    %v1404 = vlaneseq
    %v1405 = vshrl.u32 %v1404, 7
    %v1406 = vsub.s32 0, %v1405
    %v1407 = vrot.slane %v1378, %v1406
    %v1409 = vadd.f32 %v1370, %v1407
    %v1410 = vadd.f32 %v1375, %v1407
    %v1411 = vmul.f32 %v1381, %v1409
    %v1412 = vmul.f32 %v1382, %v1410
    %v1414 = vsel %vm494, %v1411, 0
    %v1417 = vsel %vm494, %v1412, 0
    %1419 = vmatprep.subr.mxu0 0.0
    %1420 = vmatpush1.msra.mxu0 0.0
    %1421 = vmatprep.subr.mxu0 0.0
    %1422 = vmatpush1.msra.mxu0 0.0
    %1423 = vmatprep.subr.mxu0 0.0
    %1424 = vmatpush1.msra.mxu0 0.0
    %1425 = vmatprep.subr.mxu0 0.0
    %1426 = vmatpush1.msra.mxu0 0.0
    %1427 = vmatprep.subr.mxu0 0.0
    %1428 = vmatpush1.msra.mxu0 0.0
    %1429 = vmatprep.subr.mxu0 0.0
    %1430 = vmatpush1.msra.mxu0 0.0
    %1431 = vmatprep.subr.mxu0 0.0
    %1432 = vmatpush1.msra.mxu0 %v1402
    %1433 = vmatprep.subr.mxu0 0.0
    %1434 = vmatpush1.msra.mxu0 %v1401
    %1435 = vmatprep.subr.mxu0 0.0
    %1436 = vmatpush1.msra.mxu0 %v1400
    %1437 = vmatprep.subr.mxu0 0.0
    %1438 = vmatpush1.msra.mxu0 %v1399
    %1439 = vmatprep.subr.mxu0 0.0
    %1440 = vmatpush1.msra.mxu0 %v1398
    %1441 = vmatprep.subr.mxu0 0.0
    %1442 = vmatpush1.msra.mxu0 %v1397
    %1443 = vmatprep.subr.mxu0 0.0
    %1444 = vmatpush1.msra.mxu0 %v1396
    %1445 = vmatprep.subr.mxu0 0.0
    %1446 = vmatpush1.msra.mxu0 %v1395
    %1447 = vmatprep.subr.mxu0 0.0
    %1448 = vmatpush1.msra.mxu0 %v1394
    %1449 = vmatprep.subr.mxu0 0.0
    %1450 = vmatpush1.msra.mxu0 %v1393
    %1451 = vmatprep.subr.mxu0 0.0
    %1452 = vmatpush2.msra.mxu0 0.0
    %1453 = vmatprep.subr.mxu0 0.0
    %1454 = vmatpush2.msra.mxu0 0.0
    %1455 = vmatprep.subr.mxu0 0.0
    %1456 = vmatpush2.msra.mxu0 0.0
    %1457 = vmatprep.subr.mxu0 0.0
    %1458 = vmatpush2.msra.mxu0 0.0
    %1459 = vmatprep.subr.mxu0 0.0
    %1460 = vmatpush2.msra.mxu0 0.0
    %1461 = vmatprep.subr.mxu0 0.0
    %1462 = vmatpush2.msra.mxu0 0.0
    %1463 = vmatprep.subr.mxu0 0.0
    %1464 = vmatpush2.msra.mxu0 0.0
    %1465 = vmatprep.subr.mxu0 0.0
    %1466 = vmatpush2.msra.mxu0 0.0
    %1467 = vmatprep.subr.mxu0 0.0
    %1468 = vmatpush2.msra.mxu0 0.0
    %1469 = vmatprep.subr.mxu0 0.0
    %1470 = vmatpush2.msra.mxu0 0.0
    %1471 = vmatprep.subr.mxu0 0.0
    %1472 = vmatpush2.msra.mxu0 0.0
    %1473 = vmatprep.subr.mxu0 0.0
    %1474 = vmatpush2.msra.mxu0 0.0
    %1475 = vmatprep.subr.mxu0 0.0
    %1476 = vmatpush2.msra.mxu0 0.0
    %1477 = vmatprep.subr.mxu0 0.0
    %1478 = vmatpush2.msra.mxu0 0.0
    %1479 = vmatprep.subr.mxu0 0.0
    %1480 = vmatpush2.msra.mxu0 0.0
    %1481 = vmatprep.subr.mxu0 0.0
    %1482 = vmatpush2.msra.mxu0 0.0
    %1483 = vmatprep.mubr.f32.mxu0 0.0
    %1484 = vmatmul.mubr.f32.gmra.mxu0 %v1414
    %v1485 = vpop.f32.mrf.mxu0
    %v1486 = vadd.f32 0.0, %v1485
    %v1487 = vpop.f32.mrf.mxu0
    %1488 = vmatprep.mubr.f32.mxu0 0.0
    %1489 = vmatmul.mubr.f32.gmra.mxu0 %v1417
    %v1490 = vpop.f32.mrf.mxu0
    %v1491 = vadd.f32 0.0, %v1490
    %v1492 = vpop.f32.mrf.mxu0
    %1493 = vdwg.mxu0
    %v1494 = vmax.f32 %v1486, 0.0
    %v1495 = vmax.f32 %v1491, 0.0
    %v1496 = vld [vmem:[%s43] sm:$0xff]
    %v1497 = vld [vmem:[%s43 + $0x8] sm:$0xff]
    %v1498 = vld [vmem:[%s45] sm:$0x1]
    %v1499 = vld [vmem:[%s47] sm:$0xf]
    %v1500 = vld [vmem:[%s47 + $0x4] sm:$0x1]
    %v1501 = vunpack.c.l.bf16 %v1499
    %v1502 = vunpack.c.l.bf16 %v1500
    %v1503 = vld [vmem:[%s49] sm:$0xf]
    %v1504 = vld [vmem:[%s49 + $0x4] sm:$0xf]
    %v1505 = vld [vmem:[%s49 + $0x8] sm:$0xf]
    %v1506 = vld [vmem:[%s49 + $0xc] sm:$0xf]
    %v1507 = vld [vmem:[%s49 + $0x10] sm:$0xf]
    %v1508 = vunpack.c.l.bf16 %v1503
    %v1509 = vunpack.c.l.bf16 %v1504
    %v1510 = vunpack.c.l.bf16 %v1505
    %v1511 = vunpack.c.l.bf16 %v1506
    %v1512 = vunpack.c.l.bf16 %v1507
    %v1514 = vlaneseq
    %v1515 = vshrl.u32 %v1514, 7
    %v1516 = vsub.s32 0, %v1515
    %v1517 = vrot.slane %v1498, %v1516
    %v1520 = vsel %vm611, %v1494, 0
    %v1523 = vsel %vm611, %v1495, 0
    %1525 = vmatprep.subr.mxu0 0.0
    %1526 = vmatpush1.msra.mxu0 0.0
    %1527 = vmatprep.subr.mxu0 0.0
    %1528 = vmatpush1.msra.mxu0 0.0
    %1529 = vmatprep.subr.mxu0 0.0
    %1530 = vmatpush1.msra.mxu0 0.0
    %1531 = vmatprep.subr.mxu0 0.0
    %1532 = vmatpush1.msra.mxu0 0.0
    %1533 = vmatprep.subr.mxu0 0.0
    %1534 = vmatpush1.msra.mxu0 0.0
    %1535 = vmatprep.subr.mxu0 0.0
    %1536 = vmatpush1.msra.mxu0 0.0
    %1537 = vmatprep.subr.mxu0 0.0
    %1538 = vmatpush1.msra.mxu0 0.0
    %1539 = vmatprep.subr.mxu0 0.0
    %1540 = vmatpush1.msra.mxu0 0.0
    %1541 = vmatprep.subr.mxu0 0.0
    %1542 = vmatpush1.msra.mxu0 0.0
    %1543 = vmatprep.subr.mxu0 0.0
    %1544 = vmatpush1.msra.mxu0 0.0
    %1545 = vmatprep.subr.mxu0 0.0
    %1546 = vmatpush1.msra.mxu0 0.0
    %1547 = vmatprep.subr.mxu0 0.0
    %1548 = vmatpush1.msra.mxu0 0.0
    %1549 = vmatprep.subr.mxu0 0.0
    %1550 = vmatpush1.msra.mxu0 0.0
    %1551 = vmatprep.subr.mxu0 0.0
    %1552 = vmatpush1.msra.mxu0 0.0
    %1553 = vmatprep.subr.mxu0 0.0
    %1554 = vmatpush1.msra.mxu0 %v1497
    %1555 = vmatprep.subr.mxu0 0.0
    %1556 = vmatpush1.msra.mxu0 %v1496
    %1557 = vmatprep.subr.mxu0 0.0
    %1558 = vmatpush2.msra.mxu0 0.0
    %1559 = vmatprep.subr.mxu0 0.0
    %1560 = vmatpush2.msra.mxu0 0.0
    %1561 = vmatprep.subr.mxu0 0.0
    %1562 = vmatpush2.msra.mxu0 0.0
    %1563 = vmatprep.subr.mxu0 0.0
    %1564 = vmatpush2.msra.mxu0 0.0
    %1565 = vmatprep.subr.mxu0 0.0
    %1566 = vmatpush2.msra.mxu0 0.0
    %1567 = vmatprep.subr.mxu0 0.0
    %1568 = vmatpush2.msra.mxu0 0.0
    %1569 = vmatprep.subr.mxu0 0.0
    %1570 = vmatpush2.msra.mxu0 0.0
    %1571 = vmatprep.subr.mxu0 0.0
    %1572 = vmatpush2.msra.mxu0 0.0
    %1573 = vmatprep.subr.mxu0 0.0
    %1574 = vmatpush2.msra.mxu0 0.0
    %1575 = vmatprep.subr.mxu0 0.0
    %1576 = vmatpush2.msra.mxu0 0.0
    %1577 = vmatprep.subr.mxu0 0.0
    %1578 = vmatpush2.msra.mxu0 0.0
    %1579 = vmatprep.subr.mxu0 0.0
    %1580 = vmatpush2.msra.mxu0 0.0
    %1581 = vmatprep.subr.mxu0 0.0
    %1582 = vmatpush2.msra.mxu0 0.0
    %1583 = vmatprep.subr.mxu0 0.0
    %1584 = vmatpush2.msra.mxu0 0.0
    %1585 = vmatprep.subr.mxu0 0.0
    %1586 = vmatpush2.msra.mxu0 0.0
    %1587 = vmatprep.subr.mxu0 0.0
    %1588 = vmatpush2.msra.mxu0 0.0
    %1589 = vmatprep.mubr.f32.mxu0 0.0
    %1590 = vmatmul.mubr.f32.gmra.mxu0 %v1520
    %v1591 = vpop.f32.mrf.mxu0
    %v1592 = vadd.f32 %v1517, %v1591
    %v1593 = vpop.f32.mrf.mxu0
    %1594 = vmatprep.mubr.f32.mxu0 0.0
    %1595 = vmatmul.mubr.f32.gmra.mxu0 %v1523
    %v1596 = vpop.f32.mrf.mxu0
    %v1597 = vadd.f32 %v1517, %v1596
    %v1598 = vpop.f32.mrf.mxu0
    %1599 = vdwg.mxu0
    %v1600 = vmul.f32 %v1501, %v1592
    %v1601 = vmul.f32 %v1502, %v1597
    %vm1602 = vcmask 326656
    %v1604 = vsel %vm1602, %v1600, 0
    %v1607 = vsel %vm1602, %v1601, 0
    %1609 = vmatprep.subr.mxu0 0.0
    %1610 = vmatpush1.msra.mxu0 0.0
    %1611 = vmatprep.subr.mxu0 0.0
    %1612 = vmatpush1.msra.mxu0 0.0
    %1613 = vmatprep.subr.mxu0 0.0
    %1614 = vmatpush1.msra.mxu0 0.0
    %1615 = vmatprep.subr.mxu0 0.0
    %1616 = vmatpush1.msra.mxu0 0.0
    %1617 = vmatprep.subr.mxu0 0.0
    %1618 = vmatpush1.msra.mxu0 0.0
    %1619 = vmatprep.subr.mxu0 0.0
    %1620 = vmatpush1.msra.mxu0 0.0
    %1621 = vmatprep.subr.mxu0 0.0
    %1622 = vmatpush1.msra.mxu0 0.0
    %1623 = vmatprep.subr.mxu0 0.0
    %1624 = vmatpush1.msra.mxu0 0.0
    %1625 = vmatprep.subr.mxu0 0.0
    %1626 = vmatpush1.msra.mxu0 0.0
    %1627 = vmatprep.subr.mxu0 0.0
    %1628 = vmatpush1.msra.mxu0 0.0
    %1629 = vmatprep.subr.mxu0 0.0
    %1630 = vmatpush1.msra.mxu0 0.0
    %1631 = vmatprep.subr.mxu0 0.0
    %1632 = vmatpush1.msra.mxu0 %v1512
    %1633 = vmatprep.subr.mxu0 0.0
    %1634 = vmatpush1.msra.mxu0 %v1511
    %1635 = vmatprep.subr.mxu0 0.0
    %1636 = vmatpush1.msra.mxu0 %v1510
    %1637 = vmatprep.subr.mxu0 0.0
    %1638 = vmatpush1.msra.mxu0 %v1509
    %1639 = vmatprep.subr.mxu0 0.0
    %1640 = vmatpush1.msra.mxu0 %v1508
    %1641 = vmatprep.subr.mxu0 0.0
    %1642 = vmatpush2.msra.mxu0 0.0
    %1643 = vmatprep.subr.mxu0 0.0
    %1644 = vmatpush2.msra.mxu0 0.0
    %1645 = vmatprep.subr.mxu0 0.0
    %1646 = vmatpush2.msra.mxu0 0.0
    %1647 = vmatprep.subr.mxu0 0.0
    %1648 = vmatpush2.msra.mxu0 0.0
    %1649 = vmatprep.subr.mxu0 0.0
    %1650 = vmatpush2.msra.mxu0 0.0
    %1651 = vmatprep.subr.mxu0 0.0
    %1652 = vmatpush2.msra.mxu0 0.0
    %1653 = vmatprep.subr.mxu0 0.0
    %1654 = vmatpush2.msra.mxu0 0.0
    %1655 = vmatprep.subr.mxu0 0.0
    %1656 = vmatpush2.msra.mxu0 0.0
    %1657 = vmatprep.subr.mxu0 0.0
    %1658 = vmatpush2.msra.mxu0 0.0
    %1659 = vmatprep.subr.mxu0 0.0
    %1660 = vmatpush2.msra.mxu0 0.0
    %1661 = vmatprep.subr.mxu0 0.0
    %1662 = vmatpush2.msra.mxu0 0.0
    %1663 = vmatprep.subr.mxu0 0.0
    %1664 = vmatpush2.msra.mxu0 0.0
    %1665 = vmatprep.subr.mxu0 0.0
    %1666 = vmatpush2.msra.mxu0 0.0
    %1667 = vmatprep.subr.mxu0 0.0
    %1668 = vmatpush2.msra.mxu0 0.0
    %1669 = vmatprep.subr.mxu0 0.0
    %1670 = vmatpush2.msra.mxu0 0.0
    %1671 = vmatprep.subr.mxu0 0.0
    %1672 = vmatpush2.msra.mxu0 0.0
    %1673 = vmatprep.mubr.f32.mxu0 0.0
    %1674 = vmatmul.mubr.f32.gmra.mxu0 %v1604
    %v1675 = vpop.f32.mrf.mxu0
    %v1676 = vadd.f32 0.0, %v1675
    %v1677 = vpop.f32.mrf.mxu0
    %1678 = vmatprep.mubr.f32.mxu0 0.0
    %1679 = vmatmul.mubr.f32.gmra.mxu0 %v1607
    %v1680 = vpop.f32.mrf.mxu0
    %v1681 = vadd.f32 0.0, %v1680
    %v1682 = vpop.f32.mrf.mxu0
    %1683 = vdwg.mxu0
    %v1684 = vld [vmem:[%s51] sm:$0xff]
    %v1685 = vld [vmem:[%s51 + $0x8] sm:$0xff]
    %v1686 = vld [vmem:[%s53] sm:$0x1]
    %v1687 = vld [vmem:[%s55] sm:$0xf]
    %v1688 = vunpack.c.l.bf16 %v1687
    %v1689 = vld [vmem:[%s57] sm:$0xf]
    %v1690 = vld [vmem:[%s57 + $0x4] sm:$0xf]
    %v1691 = vld [vmem:[%s57 + $0x8] sm:$0xf]
    %v1692 = vld [vmem:[%s57 + $0xc] sm:$0xf]
    %v1693 = vunpack.c.l.bf16 %v1689
    %v1694 = vunpack.c.l.bf16 %v1690
    %v1695 = vunpack.c.l.bf16 %v1691
    %v1696 = vunpack.c.l.bf16 %v1692
    %v1698 = vlaneseq
    %v1699 = vshrl.u32 %v1698, 7
    %v1700 = vsub.s32 0, %v1699
    %v1701 = vrot.slane %v1686, %v1700
    %v1704 = vsel %vm611, %v1061, 0
    %1706 = vmatprep.subr.mxu0 0.0
    %1707 = vmatpush1.msra.mxu0 0.0
    %1708 = vmatprep.subr.mxu0 0.0
    %1709 = vmatpush1.msra.mxu0 0.0
    %1710 = vmatprep.subr.mxu0 0.0
    %1711 = vmatpush1.msra.mxu0 0.0
    %1712 = vmatprep.subr.mxu0 0.0
    %1713 = vmatpush1.msra.mxu0 0.0
    %1714 = vmatprep.subr.mxu0 0.0
    %1715 = vmatpush1.msra.mxu0 0.0
    %1716 = vmatprep.subr.mxu0 0.0
    %1717 = vmatpush1.msra.mxu0 0.0
    %1718 = vmatprep.subr.mxu0 0.0
    %1719 = vmatpush1.msra.mxu0 0.0
    %1720 = vmatprep.subr.mxu0 0.0
    %1721 = vmatpush1.msra.mxu0 0.0
    %1722 = vmatprep.subr.mxu0 0.0
    %1723 = vmatpush1.msra.mxu0 0.0
    %1724 = vmatprep.subr.mxu0 0.0
    %1725 = vmatpush1.msra.mxu0 0.0
    %1726 = vmatprep.subr.mxu0 0.0
    %1727 = vmatpush1.msra.mxu0 0.0
    %1728 = vmatprep.subr.mxu0 0.0
    %1729 = vmatpush1.msra.mxu0 0.0
    %1730 = vmatprep.subr.mxu0 0.0
    %1731 = vmatpush1.msra.mxu0 0.0
    %1732 = vmatprep.subr.mxu0 0.0
    %1733 = vmatpush1.msra.mxu0 0.0
    %1734 = vmatprep.subr.mxu0 0.0
    %1735 = vmatpush1.msra.mxu0 %v1685
    %1736 = vmatprep.subr.mxu0 0.0
    %1737 = vmatpush1.msra.mxu0 %v1684
    %1738 = vmatprep.subr.mxu0 0.0
    %1739 = vmatpush2.msra.mxu0 0.0
    %1740 = vmatprep.subr.mxu0 0.0
    %1741 = vmatpush2.msra.mxu0 0.0
    %1742 = vmatprep.subr.mxu0 0.0
    %1743 = vmatpush2.msra.mxu0 0.0
    %1744 = vmatprep.subr.mxu0 0.0
    %1745 = vmatpush2.msra.mxu0 0.0
    %1746 = vmatprep.subr.mxu0 0.0
    %1747 = vmatpush2.msra.mxu0 0.0
    %1748 = vmatprep.subr.mxu0 0.0
    %1749 = vmatpush2.msra.mxu0 0.0
    %1750 = vmatprep.subr.mxu0 0.0
    %1751 = vmatpush2.msra.mxu0 0.0
    %1752 = vmatprep.subr.mxu0 0.0
    %1753 = vmatpush2.msra.mxu0 0.0
    %1754 = vmatprep.subr.mxu0 0.0
    %1755 = vmatpush2.msra.mxu0 0.0
    %1756 = vmatprep.subr.mxu0 0.0
    %1757 = vmatpush2.msra.mxu0 0.0
    %1758 = vmatprep.subr.mxu0 0.0
    %1759 = vmatpush2.msra.mxu0 0.0
    %1760 = vmatprep.subr.mxu0 0.0
    %1761 = vmatpush2.msra.mxu0 0.0
    %1762 = vmatprep.subr.mxu0 0.0
    %1763 = vmatpush2.msra.mxu0 0.0
    %1764 = vmatprep.subr.mxu0 0.0
    %1765 = vmatpush2.msra.mxu0 0.0
    %1766 = vmatprep.subr.mxu0 0.0
    %1767 = vmatpush2.msra.mxu0 0.0
    %1768 = vmatprep.subr.mxu0 0.0
    %1769 = vmatpush2.msra.mxu0 0.0
    %1770 = vmatprep.mubr.f32.mxu0 0.0
    %1771 = vmatmul.mubr.f32.gmra.mxu0 %v1704
    %v1772 = vpop.f32.mrf.mxu0
    %v1773 = vadd.f32 %v1701, %v1772
    %v1774 = vpop.f32.mrf.mxu0
    %1775 = vdwg.mxu0
    %v1776 = vmul.f32 %v1688, %v1773
    %vm1777 = vcmask 261120
    %v1779 = vsel %vm1777, %v1776, 0
    %1781 = vmatprep.subr.mxu0 0.0
    %1782 = vmatpush1.msra.mxu0 0.0
    %1783 = vmatprep.subr.mxu0 0.0
    %1784 = vmatpush1.msra.mxu0 0.0
    %1785 = vmatprep.subr.mxu0 0.0
    %1786 = vmatpush1.msra.mxu0 0.0
    %1787 = vmatprep.subr.mxu0 0.0
    %1788 = vmatpush1.msra.mxu0 0.0
    %1789 = vmatprep.subr.mxu0 0.0
    %1790 = vmatpush1.msra.mxu0 0.0
    %1791 = vmatprep.subr.mxu0 0.0
    %1792 = vmatpush1.msra.mxu0 0.0
    %1793 = vmatprep.subr.mxu0 0.0
    %1794 = vmatpush1.msra.mxu0 0.0
    %1795 = vmatprep.subr.mxu0 0.0
    %1796 = vmatpush1.msra.mxu0 0.0
    %1797 = vmatprep.subr.mxu0 0.0
    %1798 = vmatpush1.msra.mxu0 0.0
    %1799 = vmatprep.subr.mxu0 0.0
    %1800 = vmatpush1.msra.mxu0 0.0
    %1801 = vmatprep.subr.mxu0 0.0
    %1802 = vmatpush1.msra.mxu0 0.0
    %1803 = vmatprep.subr.mxu0 0.0
    %1804 = vmatpush1.msra.mxu0 0.0
    %1805 = vmatprep.subr.mxu0 0.0
    %1806 = vmatpush1.msra.mxu0 %v1696
    %1807 = vmatprep.subr.mxu0 0.0
    %1808 = vmatpush1.msra.mxu0 %v1695
    %1809 = vmatprep.subr.mxu0 0.0
    %1810 = vmatpush1.msra.mxu0 %v1694
    %1811 = vmatprep.subr.mxu0 0.0
    %1812 = vmatpush1.msra.mxu0 %v1693
    %1813 = vmatprep.subr.mxu0 0.0
    %1814 = vmatpush2.msra.mxu0 0.0
    %1815 = vmatprep.subr.mxu0 0.0
    %1816 = vmatpush2.msra.mxu0 0.0
    %1817 = vmatprep.subr.mxu0 0.0
    %1818 = vmatpush2.msra.mxu0 0.0
    %1819 = vmatprep.subr.mxu0 0.0
    %1820 = vmatpush2.msra.mxu0 0.0
    %1821 = vmatprep.subr.mxu0 0.0
    %1822 = vmatpush2.msra.mxu0 0.0
    %1823 = vmatprep.subr.mxu0 0.0
    %1824 = vmatpush2.msra.mxu0 0.0
    %1825 = vmatprep.subr.mxu0 0.0
    %1826 = vmatpush2.msra.mxu0 0.0
    %1827 = vmatprep.subr.mxu0 0.0
    %1828 = vmatpush2.msra.mxu0 0.0
    %1829 = vmatprep.subr.mxu0 0.0
    %1830 = vmatpush2.msra.mxu0 0.0
    %1831 = vmatprep.subr.mxu0 0.0
    %1832 = vmatpush2.msra.mxu0 0.0
    %1833 = vmatprep.subr.mxu0 0.0
    %1834 = vmatpush2.msra.mxu0 0.0
    %1835 = vmatprep.subr.mxu0 0.0
    %1836 = vmatpush2.msra.mxu0 0.0
    %1837 = vmatprep.subr.mxu0 0.0
    %1838 = vmatpush2.msra.mxu0 0.0
    %1839 = vmatprep.subr.mxu0 0.0
    %1840 = vmatpush2.msra.mxu0 0.0
    %1841 = vmatprep.subr.mxu0 0.0
    %1842 = vmatpush2.msra.mxu0 0.0
    %1843 = vmatprep.subr.mxu0 0.0
    %1844 = vmatpush2.msra.mxu0 0.0
    %1845 = vmatprep.mubr.f32.mxu0 0.0
    %1846 = vmatmul.mubr.f32.gmra.mxu0 %v1779
    %v1847 = vpop.f32.mrf.mxu0
    %v1848 = vadd.f32 0.0, %v1847
    %v1849 = vpop.f32.mrf.mxu0
    %1850 = vdwg.mxu0
    %v1852 = vsel %vm812, %v1681, 0
    %1854 = vmatprep.subr.mxu0 0.0
    %1855 = vmatpush1.msra.mxu0 0.0
    %1856 = vmatprep.subr.mxu0 0.0
    %1857 = vmatpush1.msra.mxu0 0.0
    %1858 = vmatprep.subr.mxu0 0.0
    %1859 = vmatpush1.msra.mxu0 0.0
    %1860 = vmatprep.subr.mxu0 0.0
    %1861 = vmatpush1.msra.mxu0 0.0
    %1862 = vmatprep.subr.mxu0 0.0
    %1863 = vmatpush1.msra.mxu0 0.0
    %1864 = vmatprep.subr.mxu0 0.0
    %1865 = vmatpush1.msra.mxu0 0.0
    %1866 = vmatprep.subr.mxu0 0.0
    %1867 = vmatpush1.msra.mxu0 0.0
    %1868 = vmatprep.subr.mxu0 0.0
    %1869 = vmatpush1.msra.mxu0 0.0
    %1870 = vmatprep.subr.mxu0 0.0
    %1871 = vmatpush1.msra.mxu0 0.0
    %1872 = vmatprep.subr.mxu0 0.0
    %1873 = vmatpush1.msra.mxu0 0.0
    %1874 = vmatprep.subr.mxu0 0.0
    %1875 = vmatpush1.msra.mxu0 0.0
    %1876 = vmatprep.subr.mxu0 0.0
    %1877 = vmatpush1.msra.mxu0 0.0
    %1878 = vmatprep.subr.mxu0 0.0
    %1879 = vmatpush1.msra.mxu0 0.0
    %1880 = vmatprep.subr.mxu0 0.0
    %1881 = vmatpush1.msra.mxu0 0.0
    %1882 = vmatprep.subr.mxu0 0.0
    %1883 = vmatpush1.msra.mxu0 %v1852
    %1884 = vmatprep.subr.mxu0 0.0
    %1885 = vmatpush1.msra.mxu0 %v1676
    %1886 = vmatprep.subr.mxu0 0.0
    %1887 = vmatpush2.msra.mxu0 0.0
    %1888 = vmatprep.subr.mxu0 0.0
    %1889 = vmatpush2.msra.mxu0 0.0
    %1890 = vmatprep.subr.mxu0 0.0
    %1891 = vmatpush2.msra.mxu0 0.0
    %1892 = vmatprep.subr.mxu0 0.0
    %1893 = vmatpush2.msra.mxu0 0.0
    %1894 = vmatprep.subr.mxu0 0.0
    %1895 = vmatpush2.msra.mxu0 0.0
    %1896 = vmatprep.subr.mxu0 0.0
    %1897 = vmatpush2.msra.mxu0 0.0
    %1898 = vmatprep.subr.mxu0 0.0
    %1899 = vmatpush2.msra.mxu0 0.0
    %1900 = vmatprep.subr.mxu0 0.0
    %1901 = vmatpush2.msra.mxu0 0.0
    %1902 = vmatprep.subr.mxu0 0.0
    %1903 = vmatpush2.msra.mxu0 0.0
    %1904 = vmatprep.subr.mxu0 0.0
    %1905 = vmatpush2.msra.mxu0 0.0
    %1906 = vmatprep.subr.mxu0 0.0
    %1907 = vmatpush2.msra.mxu0 0.0
    %1908 = vmatprep.subr.mxu0 0.0
    %1909 = vmatpush2.msra.mxu0 0.0
    %1910 = vmatprep.subr.mxu0 0.0
    %1911 = vmatpush2.msra.mxu0 0.0
    %1912 = vmatprep.subr.mxu0 0.0
    %1913 = vmatpush2.msra.mxu0 0.0
    %1914 = vmatprep.subr.mxu0 0.0
    %1915 = vmatpush2.msra.mxu0 0.0
    %1916 = vmatprep.subr.mxu0 0.0
    %1917 = vmatpush2.msra.mxu0 0.0
    %1918 = vmatprep.mubr.f32.mxu0 0.0
    %1919 = vmatmul.mubr.f32.gmra.mxu0 %v810
    %v1920 = vpop.f32.mrf.mxu0
    %v1921 = vadd.f32 %v1848, %v1920
    %v1922 = vpop.f32.mrf.mxu0
    %1923 = vdwg.mxu0
    %1924 = vst.msk [vmem:[#allocation2] sm:$0xff] %vm132, %v1921
    // Predicated region
    $region118: #{tpu_custom_call.1} parent=1 // pred_check
      _
    $region119: #{tpu_custom_call.1} parent=1 // pred_check_branch
      %1926 = sbr.rel (0) target = $region121
    $region120: #{tpu_custom_call.1} parent=1 // pred_region
      %s1928 = ssub.s32 128, 128
      %1929 = vsyncadd [#allocation3], %s1928
      %s1931 = sshll.u32 [#allocation2], 4
      %s1932 = int_to_ptr.vmem [resolvable:$true] %s1931
      %1934 = dma.vmem_to_hbm [thread:$0]  %s1932, 128, %s59, [#allocation3]
    $region121: #{tpu_custom_call.1} parent=1 // pred_fallthru
      _
    // Predicated region
    $region122: #{tpu_custom_call.1} parent=1 // pred_check
      _
    $region123: #{tpu_custom_call.1} parent=1 // pred_check_branch
      %1936 = sbr.rel (0) target = $region125
    $region124: #{tpu_custom_call.1} parent=1 // pred_region
      %1937 = dma.done [#allocation3], 128
    $region125: #{tpu_custom_call.1} parent=1 // pred_fallthru
      _
    %1938 = vsyncpa [#allocation3], 1

</llo_original>
